<compile_context>
chip_gen: v7x
topology: tpu7x:2x2x1
jax: 0.10.0
libtpu: 0.0.40
codegen_flags: <defaults>
</compile_context>

<pallas_src>
import math

import jax
import jax.numpy as jnp
from jax import lax
from jax.experimental import pallas as pl
from jax.experimental.pallas import tpu as pltpu  # noqa: F401  (TPU backend assumed)

EPS = 1e-5
LEAKY_SLOPE = 0.01


def _round_up(v, m):
    return (v + m - 1) // m * m


def _pad_axis(a, axis, target):
    if a.shape[axis] == target:
        return a
    widths = [(0, 0)] * a.ndim
    widths[axis] = (0, target - a.shape[axis])
    return jnp.pad(a, widths)


# ---------------------------------------------------------------------------
# Kernel 1: fused BatchNorm (batch stats) + LeakyReLU, lane-dense layout.
#   x viewed as (N, C, L) : L = D*H*W on lanes, C on sublanes.
#   Single block -> stats + normalize in one pass over the data.
# ---------------------------------------------------------------------------
def _bn_leaky_kernel(x_ref, g_ref, b_ref, o_ref):
    x = x_ref[...]                                           # (N, C, L) f32
    n, _, l = x.shape
    inv_m = 1.0 / (n * l)
    s = jnp.sum(jnp.sum(x, axis=0), axis=1, keepdims=True)   # (C, 1)  lane reduce (XLU)
    sq = jnp.sum(jnp.sum(x * x, axis=0), axis=1, keepdims=True)
    mean = s * inv_m
    var = sq * inv_m - mean * mean                           # biased var (BN train mode)
    scale = g_ref[...] * lax.rsqrt(var + EPS)                # (C, 1)
    shift = b_ref[...] - mean * scale
    y = x * scale + shift                                    # (C,1) column-broadcast
    o_ref[...] = jnp.where(y >= 0.0, y, LEAKY_SLOPE * y)


def bn_leaky(x3, gamma, beta):
    N, C, L = x3.shape
    return pl.pallas_call(
        _bn_leaky_kernel,
        out_shape=jax.ShapeDtypeStruct((N, C, L), jnp.float32),
        in_specs=[
            pl.BlockSpec((N, C, L), lambda: (0, 0, 0)),
            pl.BlockSpec((C, 1), lambda: (0, 0)),
            pl.BlockSpec((C, 1), lambda: (0, 0)),
        ],
        out_specs=pl.BlockSpec((N, C, L), lambda: (0, 0, 0)),
    )(x3, gamma.reshape(C, 1), beta.reshape(C, 1))


# ---------------------------------------------------------------------------
# Kernel 2: conv1 (im2col matmul + bias) fused with bn2 (batch stats) + LeakyReLU.
#   patches: (N, Kp, M)   weights: (C2, Kp)   output: (N, C2, M)  (M on lanes)
#   Single block holds the whole conv1 output, so bn2's batch statistics are
#   computed in-kernel -- the raw conv1 activation never hits HBM.
# ---------------------------------------------------------------------------
def _conv_bn_leaky_kernel(p_ref, w_ref, bias_ref, g_ref, bt_ref, o_ref):
    w = w_ref[...]                                           # (C2, Kp)
    bias = bias_ref[...]                                     # (C2, 1)
    n_batch, _, m = p_ref.shape
    accs = []
    s = jnp.zeros_like(bias)
    sq = jnp.zeros_like(bias)
    for n in range(n_batch):                                 # tiny static batch loop
        a = jnp.dot(w, p_ref[n], preferred_element_type=jnp.float32) + bias  # (C2, M)
        accs.append(a)
        s = s + jnp.sum(a, axis=1, keepdims=True)
        sq = sq + jnp.sum(a * a, axis=1, keepdims=True)
    inv_m = 1.0 / (n_batch * m)
    mean = s * inv_m
    var = sq * inv_m - mean * mean
    scale = g_ref[...] * lax.rsqrt(var + EPS)
    shift = bt_ref[...] - mean * scale
    for n in range(n_batch):
        y = accs[n] * scale + shift
        o_ref[n] = jnp.where(y >= 0.0, y, LEAKY_SLOPE * y)


def conv_bn_leaky(patT, w_mat, bias, gamma, beta):
    N, Kp, M = patT.shape
    C2 = w_mat.shape[0]
    return pl.pallas_call(
        _conv_bn_leaky_kernel,
        out_shape=jax.ShapeDtypeStruct((N, C2, M), jnp.float32),
        in_specs=[
            pl.BlockSpec((N, Kp, M), lambda: (0, 0, 0)),
            pl.BlockSpec((C2, Kp), lambda: (0, 0)),
            pl.BlockSpec((C2, 1), lambda: (0, 0)),
            pl.BlockSpec((C2, 1), lambda: (0, 0)),
            pl.BlockSpec((C2, 1), lambda: (0, 0)),
        ],
        out_specs=pl.BlockSpec((N, C2, M), lambda: (0, 0, 0)),
    )(patT, w_mat, bias.reshape(C2, 1), gamma.reshape(C2, 1), beta.reshape(C2, 1))


# ---------------------------------------------------------------------------
# Kernel 3: conv2 (im2col matmul + bias) fused with the residual add (+ x).
# ---------------------------------------------------------------------------
def _conv_residual_kernel(p_ref, w_ref, bias_ref, x_ref, o_ref):
    w = w_ref[...]                                           # (C, Kp)
    bias = bias_ref[...]                                     # (C, 1)
    for n in range(p_ref.shape[0]):
        a = jnp.dot(w, p_ref[n], preferred_element_type=jnp.float32) + bias
        o_ref[n] = a + x_ref[n]                              # fused residual


def conv_residual(patT, w_mat, bias, xres3):
    N, Kp, M = patT.shape
    C = w_mat.shape[0]
    return pl.pallas_call(
        _conv_residual_kernel,
        out_shape=jax.ShapeDtypeStruct((N, C, M), jnp.float32),
        in_specs=[
            pl.BlockSpec((N, Kp, M), lambda: (0, 0, 0)),
            pl.BlockSpec((C, Kp), lambda: (0, 0)),
            pl.BlockSpec((C, 1), lambda: (0, 0)),
            pl.BlockSpec((N, C, M), lambda: (0, 0, 0)),
        ],
        out_specs=pl.BlockSpec((N, C, M), lambda: (0, 0, 0)),
    )(patT, w_mat, bias.reshape(C, 1), xres3)


# ---------------------------------------------------------------------------
# Glue: "transposed" im2col built directly from NCDHW (pad + strided slices +
# stack + contiguous reshape; no transpose of the 27x-expanded tensor).
# K ordering is (C, kd, kh, kw), matching torch Conv3d weight.reshape(Cout, -1).
# ---------------------------------------------------------------------------
def im2col_T(y, ksize, stride, pad):
    N, C, D, H, W = y.shape
    k = ksize
    yp = jnp.pad(y, ((0, 0), (0, 0), (pad, pad), (pad, pad), (pad, pad)))
    Do = (D + 2 * pad - k) // stride + 1
    Ho = (H + 2 * pad - k) // stride + 1
    Wo = (W + 2 * pad - k) // stride + 1
    cols = []
    for dz in range(k):
        for dy in range(k):
            for dx in range(k):
                cols.append(
                    yp[:, :,
                       dz:dz + stride * Do:stride,
                       dy:dy + stride * Ho:stride,
                       dx:dx + stride * Wo:stride])
    col = jnp.stack(cols, axis=2)                            # (N, C, k^3, Do, Ho, Wo)
    return col.reshape(N, C * k ** 3, Do * Ho * Wo), (Do, Ho, Wo)


# ---------------------------------------------------------------------------
# Basic_block_inplace forward
# ---------------------------------------------------------------------------
def basic_block_inplace(x, params):
    N, C, D, H, W = x.shape
    L = D * H * W
    x3 = x.reshape(N, C, L)                                  # free reshape, NCDHW layout

    # bn1 + leaky_relu
    y1 = bn_leaky(x3, params["gamma1"], params["beta1"]).reshape(N, C, D, H, W)

    # conv1 (3x3x3, stride 1, pad 1) fused with bn2 + leaky_relu
    pat1, (Do, Ho, Wo) = im2col_T(y1, 3, 1, 1)
    C2 = params["w1"].shape[0]
    K1 = C * 27
    K1p = _round_up(K1, 128)                                 # lane-align contraction dim
    pat1 = _pad_axis(pat1, 1, K1p)
    w1m = _pad_axis(params["w1"].reshape(C2, K1), 1, K1p)
    y3 = conv_bn_leaky(pat1, w1m, params["b1"], params["gamma2"], params["beta2"])
    y3 = y3.reshape(N, C2, Do, Ho, Wo)

    # conv2 (3x3x3, stride 1, pad 1) + bias, fused with residual (+ x)
    pat2, _ = im2col_T(y3, 3, 1, 1)
    K2 = C2 * 27
    K2p = _round_up(K2, 128)
    pat2 = _pad_axis(pat2, 1, K2p)
    w2m = _pad_axis(params["w2"].reshape(C, K2), 1, K2p)
    out3 = conv_residual(pat2, w2m, params["b2"], x3)
    return out3.reshape(N, C, D, H, W)


# ---------------------------------------------------------------------------
# Pure-JAX reference (correctness check)
# ---------------------------------------------------------------------------
def reference(x, params):
    def bn_act(v, g, b):
        mean = jnp.mean(v, axis=(0, 2, 3, 4), keepdims=True)
        var = jnp.mean(v * v, axis=(0, 2, 3, 4), keepdims=True) - mean * mean
        y = (v - mean) * lax.rsqrt(var + EPS) * g.reshape(1, -1, 1, 1, 1) \
            + b.reshape(1, -1, 1, 1, 1)
        return jnp.where(y >= 0.0, y, LEAKY_SLOPE * y)

    def conv(v, w, b):
        o = lax.conv_general_dilated(
            v, w, window_strides=(1, 1, 1), padding=[(1, 1)] * 3,
            dimension_numbers=("NCDHW", "OIDHW", "NCDHW"),
            precision=lax.Precision.HIGHEST)
        return o + b.reshape(1, -1, 1, 1, 1)

    y = bn_act(x, params["gamma1"], params["beta1"])
    y = conv(y, params["w1"], params["b1"])
    y = bn_act(y, params["gamma2"], params["beta2"])
    y = conv(y, params["w2"], params["b2"])
    return y + x


if __name__ == "__main__":
    # inplanes == planes == 8, stride == 1 (required by the residual add).
    planes = 8
    N, D, H, W = 2, 8, 8, 8

    key = jax.random.PRNGKey(0)
    kx, kw1, kb1, kw2, kb2, kg1, kbt1, kg2, kbt2 = jax.random.split(key, 9)
    x = jax.random.normal(kx, (N, planes, D, H, W), dtype=jnp.float32)

    fan_in = planes * 27
    bound = 1.0 / math.sqrt(fan_in)
    params = {
        "gamma1": 1.0 + 0.1 * jax.random.normal(kg1, (planes,), jnp.float32),
        "beta1": 0.1 * jax.random.normal(kbt1, (planes,), jnp.float32),
        "w1": jax.random.uniform(kw1, (planes, planes, 3, 3, 3),
                                 minval=-bound, maxval=bound, dtype=jnp.float32),
        "b1": jax.random.uniform(kb1, (planes,),
                                 minval=-bound, maxval=bound, dtype=jnp.float32),
        "gamma2": 1.0 + 0.1 * jax.random.normal(kg2, (planes,), jnp.float32),
        "beta2": 0.1 * jax.random.normal(kbt2, (planes,), jnp.float32),
        "w2": jax.random.uniform(kw2, (planes, planes, 3, 3, 3),
                                 minval=-bound, maxval=bound, dtype=jnp.float32),
        "b2": jax.random.uniform(kb2, (planes,),
                                 minval=-bound, maxval=bound, dtype=jnp.float32),
    }

    out = jax.jit(basic_block_inplace)(x, params)
    out = jax.block_until_ready(out)

    ref = reference(x, params)
    assert out.shape == ref.shape == (N, planes, D, H, W)
    max_err = float(jnp.abs(out - ref).max())
    assert jnp.allclose(out, ref, atol=5e-4, rtol=5e-4), max_err

    print("KERNEL_OK")
</pallas_src>

<mosaic_0001>
module attributes {stable_mosaic.version = 11 : i64} {
  func.func @_bn_leaky_kernel(%arg0: memref<2x8x512xf32, #tpu.memory_space<vmem>>, %arg1: memref<8x1xf32, #tpu.memory_space<vmem>>, %arg2: memref<8x1xf32, #tpu.memory_space<vmem>>, %arg3: memref<2x8x512xf32, #tpu.memory_space<vmem>>) attributes {dimension_semantics = [], scalar_prefetch = 0 : i64, scratch_operands = 0 : i64, tpu.core_type = #tpu.core_type<tc>} {
    %c0 = arith.constant 0 : index
    %c0_0 = arith.constant 0 : index
    %c0_1 = arith.constant 0 : index
    %0 = vector.load %arg0[%c0, %c0_0, %c0_1] : memref<2x8x512xf32, #tpu.memory_space<vmem>>, vector<2x8x512xf32>
    %cst = arith.constant dense<0.000000e+00> : vector<8x512xf32>
    %1 = vector.multi_reduction <add>, %0, %cst [0] : vector<2x8x512xf32> to vector<8x512xf32>
    %cst_2 = arith.constant dense<0.000000e+00> : vector<8xf32>
    %2 = vector.multi_reduction <add>, %1, %cst_2 [1] : vector<8x512xf32> to vector<8xf32>
    %3 = vector.shape_cast %2 : vector<8xf32> to vector<8x1xf32>
    %4 = arith.mulf %0, %0 : vector<2x8x512xf32>
    %cst_3 = arith.constant dense<0.000000e+00> : vector<8x512xf32>
    %5 = vector.multi_reduction <add>, %4, %cst_3 [0] : vector<2x8x512xf32> to vector<8x512xf32>
    %cst_4 = arith.constant dense<0.000000e+00> : vector<8xf32>
    %6 = vector.multi_reduction <add>, %5, %cst_4 [1] : vector<8x512xf32> to vector<8xf32>
    %7 = vector.shape_cast %6 : vector<8xf32> to vector<8x1xf32>
    %cst_5 = arith.constant 9.765625E-4 : f32
    %8 = vector.broadcast %cst_5 : f32 to vector<8x1xf32>
    %9 = arith.mulf %3, %8 : vector<8x1xf32>
    %cst_6 = arith.constant 9.765625E-4 : f32
    %10 = vector.broadcast %cst_6 : f32 to vector<8x1xf32>
    %11 = arith.mulf %7, %10 : vector<8x1xf32>
    %12 = arith.mulf %9, %9 : vector<8x1xf32>
    %13 = arith.subf %11, %12 : vector<8x1xf32>
    %c0_7 = arith.constant 0 : index
    %c0_8 = arith.constant 0 : index
    %14 = vector.load %arg1[%c0_7, %c0_8] : memref<8x1xf32, #tpu.memory_space<vmem>>, vector<8x1xf32>
    %cst_9 = arith.constant 9.99999974E-6 : f32
    %15 = vector.broadcast %cst_9 : f32 to vector<8x1xf32>
    %16 = arith.addf %13, %15 : vector<8x1xf32>
    %17 = math.rsqrt %16 : vector<8x1xf32>
    %18 = arith.mulf %14, %17 : vector<8x1xf32>
    %c0_10 = arith.constant 0 : index
    %c0_11 = arith.constant 0 : index
    %19 = vector.load %arg2[%c0_10, %c0_11] : memref<8x1xf32, #tpu.memory_space<vmem>>, vector<8x1xf32>
    %20 = arith.mulf %9, %18 : vector<8x1xf32>
    %21 = arith.subf %19, %20 : vector<8x1xf32>
    %22 = vector.shape_cast %18 : vector<8x1xf32> to vector<1x8x1xf32>
    %23 = vector.broadcast %22 : vector<1x8x1xf32> to vector<2x8x512xf32>
    %24 = arith.mulf %0, %23 : vector<2x8x512xf32>
    %25 = vector.shape_cast %21 : vector<8x1xf32> to vector<1x8x1xf32>
    %26 = vector.broadcast %25 : vector<1x8x1xf32> to vector<2x8x512xf32>
    %27 = arith.addf %24, %26 : vector<2x8x512xf32>
    %cst_12 = arith.constant 0.000000e+00 : f32
    %28 = vector.broadcast %cst_12 : f32 to vector<2x8x512xf32>
    %29 = arith.cmpf oge, %27, %28 : vector<2x8x512xf32>
    %cst_13 = arith.constant 0.00999999977 : f32
    %30 = vector.broadcast %cst_13 : f32 to vector<2x8x512xf32>
    %31 = arith.mulf %30, %27 : vector<2x8x512xf32>
    %32 = arith.select %29, %27, %31 : vector<2x8x512xi1>, vector<2x8x512xf32>
    %c0_14 = arith.constant 0 : index
    %c0_15 = arith.constant 0 : index
    %c0_16 = arith.constant 0 : index
    %33 = vector.load %arg3[%c0_14, %c0_15, %c0_16] : memref<2x8x512xf32, #tpu.memory_space<vmem>>, vector<2x8x512xf32>
    tpu.vector_store %arg3[%c0_14, %c0_15, %c0_16], %32 {strides = array<i32>} : memref<2x8x512xf32, #tpu.memory_space<vmem>>, vector<2x8x512xf32>,
    return
  }
}

module attributes {stable_mosaic.version = 11 : i64} {
  func.func @_conv_residual_kernel(%arg0: memref<2x256x512xf32, #tpu.memory_space<vmem>>, %arg1: memref<8x256xf32, #tpu.memory_space<vmem>>, %arg2: memref<8x1xf32, #tpu.memory_space<vmem>>, %arg3: memref<2x8x512xf32, #tpu.memory_space<vmem>>, %arg4: memref<2x8x512xf32, #tpu.memory_space<vmem>>) attributes {dimension_semantics = [], scalar_prefetch = 0 : i64, scratch_operands = 0 : i64, tpu.core_type = #tpu.core_type<tc>} {
    %c0 = arith.constant 0 : index
    %c0_0 = arith.constant 0 : index
    %0 = vector.load %arg1[%c0, %c0_0] : memref<8x256xf32, #tpu.memory_space<vmem>>, vector<8x256xf32>
    %c0_1 = arith.constant 0 : index
    %c0_2 = arith.constant 0 : index
    %1 = vector.load %arg2[%c0_1, %c0_2] : memref<8x1xf32, #tpu.memory_space<vmem>>, vector<8x1xf32>
    %c0_3 = arith.constant 0 : index
    %c0_4 = arith.constant 0 : index
    %c0_5 = arith.constant 0 : index
    %2 = vector.load %arg0[%c0_3, %c0_4, %c0_5] : memref<2x256x512xf32, #tpu.memory_space<vmem>>, vector<1x256x512xf32>
    %3 = vector.shape_cast %2 : vector<1x256x512xf32> to vector<256x512xf32>
    %cst = arith.constant dense<0.000000e+00> : vector<8x512xf32>
    %4 = tpu.matmul %0, %3, %cst {dimension_numbers = #tpu.dot_dimension_numbers<[1], [0], [0], [1], [0, 0, 1, 1], [], []>} : vector<8x256xf32>, vector<256x512xf32>, vector<8x512xf32> -> vector<8x512xf32>
    %5 = vector.broadcast %1 : vector<8x1xf32> to vector<8x512xf32>
    %6 = arith.addf %4, %5 : vector<8x512xf32>
    %c0_6 = arith.constant 0 : index
    %c0_7 = arith.constant 0 : index
    %c0_8 = arith.constant 0 : index
    %7 = vector.load %arg3[%c0_6, %c0_7, %c0_8] : memref<2x8x512xf32, #tpu.memory_space<vmem>>, vector<1x8x512xf32>
    %8 = vector.shape_cast %7 : vector<1x8x512xf32> to vector<8x512xf32>
    %9 = arith.addf %6, %8 : vector<8x512xf32>
    %c0_9 = arith.constant 0 : index
    %c0_10 = arith.constant 0 : index
    %c0_11 = arith.constant 0 : index
    %10 = vector.load %arg4[%c0_9, %c0_10, %c0_11] : memref<2x8x512xf32, #tpu.memory_space<vmem>>, vector<1x8x512xf32>
    %11 = vector.shape_cast %10 : vector<1x8x512xf32> to vector<8x512xf32>
    %12 = vector.shape_cast %9 : vector<8x512xf32> to vector<1x8x512xf32>
    tpu.vector_store %arg4[%c0_9, %c0_10, %c0_11], %12 {strides = array<i32>} : memref<2x8x512xf32, #tpu.memory_space<vmem>>, vector<1x8x512xf32>,
    %c1 = arith.constant 1 : index
    %c0_12 = arith.constant 0 : index
    %c0_13 = arith.constant 0 : index
    %13 = vector.load %arg0[%c1, %c0_12, %c0_13] : memref<2x256x512xf32, #tpu.memory_space<vmem>>, vector<1x256x512xf32>
    %14 = vector.shape_cast %13 : vector<1x256x512xf32> to vector<256x512xf32>
    %cst_14 = arith.constant dense<0.000000e+00> : vector<8x512xf32>
    %15 = tpu.matmul %0, %14, %cst_14 {dimension_numbers = #tpu.dot_dimension_numbers<[1], [0], [0], [1], [0, 0, 1, 1], [], []>} : vector<8x256xf32>, vector<256x512xf32>, vector<8x512xf32> -> vector<8x512xf32>
    %16 = vector.broadcast %1 : vector<8x1xf32> to vector<8x512xf32>
    %17 = arith.addf %15, %16 : vector<8x512xf32>
    %c1_15 = arith.constant 1 : index
    %c0_16 = arith.constant 0 : index
    %c0_17 = arith.constant 0 : index
    %18 = vector.load %arg3[%c1_15, %c0_16, %c0_17] : memref<2x8x512xf32, #tpu.memory_space<vmem>>, vector<1x8x512xf32>
    %19 = vector.shape_cast %18 : vector<1x8x512xf32> to vector<8x512xf32>
    %20 = arith.addf %17, %19 : vector<8x512xf32>
    %c1_18 = arith.constant 1 : index
    %c0_19 = arith.constant 0 : index
    %c0_20 = arith.constant 0 : index
    %21 = vector.load %arg4[%c1_18, %c0_19, %c0_20] : memref<2x8x512xf32, #tpu.memory_space<vmem>>, vector<1x8x512xf32>
    %22 = vector.shape_cast %21 : vector<1x8x512xf32> to vector<8x512xf32>
    %23 = vector.shape_cast %20 : vector<8x512xf32> to vector<1x8x512xf32>
    tpu.vector_store %arg4[%c1_18, %c0_19, %c0_20], %23 {strides = array<i32>} : memref<2x8x512xf32, #tpu.memory_space<vmem>>, vector<1x8x512xf32>,
    return
  }
}

module attributes {stable_mosaic.version = 11 : i64} {
  func.func @_conv_bn_leaky_kernel(%arg0: memref<2x256x512xf32, #tpu.memory_space<vmem>>, %arg1: memref<8x256xf32, #tpu.memory_space<vmem>>, %arg2: memref<8x1xf32, #tpu.memory_space<vmem>>, %arg3: memref<8x1xf32, #tpu.memory_space<vmem>>, %arg4: memref<8x1xf32, #tpu.memory_space<vmem>>, %arg5: memref<2x8x512xf32, #tpu.memory_space<vmem>>) attributes {dimension_semantics = [], scalar_prefetch = 0 : i64, scratch_operands = 0 : i64, tpu.core_type = #tpu.core_type<tc>} {
    %c0 = arith.constant 0 : index
    %c0_0 = arith.constant 0 : index
    %0 = vector.load %arg1[%c0, %c0_0] : memref<8x256xf32, #tpu.memory_space<vmem>>, vector<8x256xf32>
    %c0_1 = arith.constant 0 : index
    %c0_2 = arith.constant 0 : index
    %1 = vector.load %arg2[%c0_1, %c0_2] : memref<8x1xf32, #tpu.memory_space<vmem>>, vector<8x1xf32>
    %cst = arith.constant 0.000000e+00 : f32
    %2 = vector.broadcast %cst : f32 to vector<8x1xf32>
    %cst_3 = arith.constant 0.000000e+00 : f32
    %3 = vector.broadcast %cst_3 : f32 to vector<8x1xf32>
    %c0_4 = arith.constant 0 : index
    %c0_5 = arith.constant 0 : index
    %c0_6 = arith.constant 0 : index
    %4 = vector.load %arg0[%c0_4, %c0_5, %c0_6] : memref<2x256x512xf32, #tpu.memory_space<vmem>>, vector<1x256x512xf32>
    %5 = vector.shape_cast %4 : vector<1x256x512xf32> to vector<256x512xf32>
    %cst_7 = arith.constant dense<0.000000e+00> : vector<8x512xf32>
    %6 = tpu.matmul %0, %5, %cst_7 {dimension_numbers = #tpu.dot_dimension_numbers<[1], [0], [0], [1], [0, 0, 1, 1], [], []>} : vector<8x256xf32>, vector<256x512xf32>, vector<8x512xf32> -> vector<8x512xf32>
    %7 = vector.broadcast %1 : vector<8x1xf32> to vector<8x512xf32>
    %8 = arith.addf %6, %7 : vector<8x512xf32>
    %cst_8 = arith.constant dense<0.000000e+00> : vector<8xf32>
    %9 = vector.multi_reduction <add>, %8, %cst_8 [1] : vector<8x512xf32> to vector<8xf32>
    %10 = vector.shape_cast %9 : vector<8xf32> to vector<8x1xf32>
    %11 = arith.addf %2, %10 : vector<8x1xf32>
    %12 = arith.mulf %8, %8 : vector<8x512xf32>
    %cst_9 = arith.constant dense<0.000000e+00> : vector<8xf32>
    %13 = vector.multi_reduction <add>, %12, %cst_9 [1] : vector<8x512xf32> to vector<8xf32>
    %14 = vector.shape_cast %13 : vector<8xf32> to vector<8x1xf32>
    %15 = arith.addf %3, %14 : vector<8x1xf32>
    %c1 = arith.constant 1 : index
    %c0_10 = arith.constant 0 : index
    %c0_11 = arith.constant 0 : index
    %16 = vector.load %arg0[%c1, %c0_10, %c0_11] : memref<2x256x512xf32, #tpu.memory_space<vmem>>, vector<1x256x512xf32>
    %17 = vector.shape_cast %16 : vector<1x256x512xf32> to vector<256x512xf32>
    %cst_12 = arith.constant dense<0.000000e+00> : vector<8x512xf32>
    %18 = tpu.matmul %0, %17, %cst_12 {dimension_numbers = #tpu.dot_dimension_numbers<[1], [0], [0], [1], [0, 0, 1, 1], [], []>} : vector<8x256xf32>, vector<256x512xf32>, vector<8x512xf32> -> vector<8x512xf32>
    %19 = vector.broadcast %1 : vector<8x1xf32> to vector<8x512xf32>
    %20 = arith.addf %18, %19 : vector<8x512xf32>
    %cst_13 = arith.constant dense<0.000000e+00> : vector<8xf32>
    %21 = vector.multi_reduction <add>, %20, %cst_13 [1] : vector<8x512xf32> to vector<8xf32>
    %22 = vector.shape_cast %21 : vector<8xf32> to vector<8x1xf32>
    %23 = arith.addf %11, %22 : vector<8x1xf32>
    %24 = arith.mulf %20, %20 : vector<8x512xf32>
    %cst_14 = arith.constant dense<0.000000e+00> : vector<8xf32>
    %25 = vector.multi_reduction <add>, %24, %cst_14 [1] : vector<8x512xf32> to vector<8xf32>
    %26 = vector.shape_cast %25 : vector<8xf32> to vector<8x1xf32>
    %27 = arith.addf %15, %26 : vector<8x1xf32>
    %cst_15 = arith.constant 9.765625E-4 : f32
    %28 = vector.broadcast %cst_15 : f32 to vector<8x1xf32>
    %29 = arith.mulf %23, %28 : vector<8x1xf32>
    %cst_16 = arith.constant 9.765625E-4 : f32
    %30 = vector.broadcast %cst_16 : f32 to vector<8x1xf32>
    %31 = arith.mulf %27, %30 : vector<8x1xf32>
    %32 = arith.mulf %29, %29 : vector<8x1xf32>
    %33 = arith.subf %31, %32 : vector<8x1xf32>
    %c0_17 = arith.constant 0 : index
    %c0_18 = arith.constant 0 : index
    %34 = vector.load %arg3[%c0_17, %c0_18] : memref<8x1xf32, #tpu.memory_space<vmem>>, vector<8x1xf32>
    %cst_19 = arith.constant 9.99999974E-6 : f32
    %35 = vector.broadcast %cst_19 : f32 to vector<8x1xf32>
    %36 = arith.addf %33, %35 : vector<8x1xf32>
    %37 = math.rsqrt %36 : vector<8x1xf32>
    %38 = arith.mulf %34, %37 : vector<8x1xf32>
    %c0_20 = arith.constant 0 : index
    %c0_21 = arith.constant 0 : index
    %39 = vector.load %arg4[%c0_20, %c0_21] : memref<8x1xf32, #tpu.memory_space<vmem>>, vector<8x1xf32>
    %40 = arith.mulf %29, %38 : vector<8x1xf32>
    %41 = arith.subf %39, %40 : vector<8x1xf32>
    %42 = vector.broadcast %38 : vector<8x1xf32> to vector<8x512xf32>
    %43 = arith.mulf %8, %42 : vector<8x512xf32>
    %44 = vector.broadcast %41 : vector<8x1xf32> to vector<8x512xf32>
    %45 = arith.addf %43, %44 : vector<8x512xf32>
    %cst_22 = arith.constant 0.000000e+00 : f32
    %46 = vector.broadcast %cst_22 : f32 to vector<8x512xf32>
    %47 = arith.cmpf oge, %45, %46 : vector<8x512xf32>
    %cst_23 = arith.constant 0.00999999977 : f32
    %48 = vector.broadcast %cst_23 : f32 to vector<8x512xf32>
    %49 = arith.mulf %48, %45 : vector<8x512xf32>
    %50 = arith.select %47, %45, %49 : vector<8x512xi1>, vector<8x512xf32>
    %c0_24 = arith.constant 0 : index
    %c0_25 = arith.constant 0 : index
    %c0_26 = arith.constant 0 : index
    %51 = vector.load %arg5[%c0_24, %c0_25, %c0_26] : memref<2x8x512xf32, #tpu.memory_space<vmem>>, vector<1x8x512xf32>
    %52 = vector.shape_cast %51 : vector<1x8x512xf32> to vector<8x512xf32>
    %53 = vector.shape_cast %50 : vector<8x512xf32> to vector<1x8x512xf32>
    tpu.vector_store %arg5[%c0_24, %c0_25, %c0_26], %53 {strides = array<i32>} : memref<2x8x512xf32, #tpu.memory_space<vmem>>, vector<1x8x512xf32>,
    %54 = vector.broadcast %38 : vector<8x1xf32> to vector<8x512xf32>
    %55 = arith.mulf %20, %54 : vector<8x512xf32>
    %56 = vector.broadcast %41 : vector<8x1xf32> to vector<8x512xf32>
    %57 = arith.addf %55, %56 : vector<8x512xf32>
    %cst_27 = arith.constant 0.000000e+00 : f32
    %58 = vector.broadcast %cst_27 : f32 to vector<8x512xf32>
    %59 = arith.cmpf oge, %57, %58 : vector<8x512xf32>
    %cst_28 = arith.constant 0.00999999977 : f32
    %60 = vector.broadcast %cst_28 : f32 to vector<8x512xf32>
    %61 = arith.mulf %60, %57 : vector<8x512xf32>
    %62 = arith.select %59, %57, %61 : vector<8x512xi1>, vector<8x512xf32>
    %c1_29 = arith.constant 1 : index
    %c0_30 = arith.constant 0 : index
    %c0_31 = arith.constant 0 : index
    %63 = vector.load %arg5[%c1_29, %c0_30, %c0_31] : memref<2x8x512xf32, #tpu.memory_space<vmem>>, vector<1x8x512xf32>
    %64 = vector.shape_cast %63 : vector<1x8x512xf32> to vector<8x512xf32>
    %65 = vector.shape_cast %62 : vector<8x512xf32> to vector<1x8x512xf32>
    tpu.vector_store %arg5[%c1_29, %c0_30, %c0_31], %65 {strides = array<i32>} : memref<2x8x512xf32, #tpu.memory_space<vmem>>, vector<1x8x512xf32>,
    return
  }
}

</mosaic_0001>

<llo_original>
// kernel: basic_block_inplace.3
$region0: #{basic_block_inplace.3}
  #allocation0 [shape = 'u32[]', space=smem, size = 0x4, offset = 0x4, fixed_abs, tag = 'smem constant byte address 0x4 - core index']
  #allocation1 [shape = 'u32[144,128]{1,0:T(1,128)}', space=vmem, size = 0x12000, scoped, tag = 'internal scratch']
  %s0 = inlined_call_operand.vmem [shape: f32[2,8,512], index: 0, kind: input, shape index: {}]
  %s1 = inlined_call_operand.vmem [shape: f32[8,1], index: 1, kind: input, shape index: {}]
  %s2 = inlined_call_operand.vmem [shape: f32[8,1], index: 2, kind: input, shape index: {}]
  %s3 = inlined_call_operand.vmem [shape: f32[2,8,512], index: 3, kind: output, shape index: {}]
  %s4 = sld [smem:[#allocation0]]
  $region22: #{basic_block_inplace.3} parent=0
    _
  %s6 = ssub.s32 1, %s4
  %s7 = scalar_select 0, %s6, %s4
  // Predicated region
  $region2: #{basic_block_inplace.3} parent=0 // pred_check
    _
  $region3: #{basic_block_inplace.3} parent=0 // pred_check_branch
    %9 = sbr.rel (0) target = $region5
  $region4: #{basic_block_inplace.3} parent=0 // pred_region
    _
  $region5: #{basic_block_inplace.3} parent=0 // pred_fallthru
    _
  // Predicated region
  $region6: #{basic_block_inplace.3} parent=0 // pred_check
    _
  $region7: #{basic_block_inplace.3} parent=0 // pred_check_branch
    %11 = sbr.rel (0) target = $region9
  $region8: #{basic_block_inplace.3} parent=0 // pred_region
    _
  $region9: #{basic_block_inplace.3} parent=0 // pred_fallthru
    _
  // Predicated region
  $region10: #{basic_block_inplace.3} parent=0 // pred_check
    _
  $region11: #{basic_block_inplace.3} parent=0 // pred_check_branch
    %13 = sbr.rel (0) target = $region13
  $region12: #{basic_block_inplace.3} parent=0 // pred_region
    _
  $region13: #{basic_block_inplace.3} parent=0 // pred_fallthru
    _
  %v14 = vld [vmem:[%s0] sm:$0xff]
  %v15 = vld [vmem:[%s0 + $0x8] sm:$0xff]
  %v16 = vld [vmem:[%s0 + $0x10] sm:$0xff]
  %v17 = vld [vmem:[%s0 + $0x18] sm:$0xff]
  %v18 = vld [vmem:[%s0 + $0x20] sm:$0xff]
  %v19 = vld [vmem:[%s0 + $0x28] sm:$0xff]
  %v20 = vld [vmem:[%s0 + $0x30] sm:$0xff]
  %v21 = vld [vmem:[%s0 + $0x38] sm:$0xff]
  %v22 = vadd.f32 %v14, %v18
  %v23 = vadd.f32 %v15, %v19
  %v24 = vadd.f32 %v16, %v20
  %v25 = vadd.f32 %v17, %v21
  %v26 = vadd.f32 %v22, %v23
  %v27 = vadd.f32 %v26, %v24
  %v28 = vadd.f32 %v27, %v25
  %29 = vadd.xlane.f32.xlu0 %v28
  %v30 = vpop.xlane.xlu0 %29
  %v31 = vmul.f32 %v14, %v14
  %v32 = vmul.f32 %v15, %v15
  %v33 = vmul.f32 %v16, %v16
  %v34 = vmul.f32 %v17, %v17
  %v35 = vmul.f32 %v18, %v18
  %v36 = vmul.f32 %v19, %v19
  %v37 = vmul.f32 %v20, %v20
  %v38 = vmul.f32 %v21, %v21
  %v39 = vadd.f32 %v31, %v35
  %v40 = vadd.f32 %v32, %v36
  %v41 = vadd.f32 %v33, %v37
  %v42 = vadd.f32 %v34, %v38
  %v43 = vadd.f32 %v39, %v40
  %v44 = vadd.f32 %v43, %v41
  %v45 = vadd.f32 %v44, %v42
  %46 = vadd.xlane.f32.xlu0 %v45
  %v47 = vpop.xlane.xlu0 %46
  %v48 = vmul.f32 %v30, 0.0009765625
  %v49 = vmul.f32 %v47, 0.0009765625
  %v50 = vmul.f32 %v48, %v48
  %v51 = vsub.f32 %v49, %v50
  %v52 = vld [vmem:[%s1] sm:$0xff]
  %v53 = vadd.f32 %v51, 1e-05
  %v54 = vrsqrt.pop %v53
  %v55 = vmul.f32 %v52, %v54
  %v56 = vld [vmem:[%s2] sm:$0xff]
  %v57 = vmul.f32 %v48, %v55
  %v58 = vsub.f32 %v56, %v57
  %60 = vset.pattern.permute.xlu0 0
  %61 = vperm.xlu0 %60, %v55
  %v62 = vpop.permute.xlu0 %61
  %v64 = vmul.f32 %v14, %v62
  %v65 = vmul.f32 %v15, %v62
  %v66 = vmul.f32 %v16, %v62
  %v67 = vmul.f32 %v17, %v62
  %v68 = vmul.f32 %v18, %v62
  %v69 = vmul.f32 %v19, %v62
  %v70 = vmul.f32 %v20, %v62
  %v71 = vmul.f32 %v21, %v62
  %73 = vset.pattern.permute.xlu0 0
  %74 = vperm.xlu0 %73, %v58
  %v75 = vpop.permute.xlu0 %74
  %v77 = vadd.f32 %v64, %v75
  %v78 = vadd.f32 %v65, %v75
  %v79 = vadd.f32 %v66, %v75
  %v80 = vadd.f32 %v67, %v75
  %v81 = vadd.f32 %v68, %v75
  %v82 = vadd.f32 %v69, %v75
  %v83 = vadd.f32 %v70, %v75
  %v84 = vadd.f32 %v71, %v75
  %vm85 = vcmp.ge.f32.partialorder %v77, 0.0
  %vm86 = vcmp.ge.f32.partialorder %v78, 0.0
  %vm87 = vcmp.ge.f32.partialorder %v79, 0.0
  %vm88 = vcmp.ge.f32.partialorder %v80, 0.0
  %vm89 = vcmp.ge.f32.partialorder %v81, 0.0
  %vm90 = vcmp.ge.f32.partialorder %v82, 0.0
  %vm91 = vcmp.ge.f32.partialorder %v83, 0.0
  %vm92 = vcmp.ge.f32.partialorder %v84, 0.0
  %v93 = vmul.f32 %v77, 0.01
  %v94 = vmul.f32 %v78, 0.01
  %v95 = vmul.f32 %v79, 0.01
  %v96 = vmul.f32 %v80, 0.01
  %v97 = vmul.f32 %v81, 0.01
  %v98 = vmul.f32 %v82, 0.01
  %v99 = vmul.f32 %v83, 0.01
  %v100 = vmul.f32 %v84, 0.01
  %v101 = vsel %vm85, %v77, %v93
  %v102 = vsel %vm86, %v78, %v94
  %v103 = vsel %vm87, %v79, %v95
  %v104 = vsel %vm88, %v80, %v96
  %v105 = vsel %vm89, %v81, %v97
  %v106 = vsel %vm90, %v82, %v98
  %v107 = vsel %vm91, %v83, %v99
  %v108 = vsel %vm92, %v84, %v100
  %109 = vst [vmem:[%s3] sm:$0xff] %v101
  %110 = vst [vmem:[%s3 + $0x8] sm:$0xff] %v102
  %111 = vst [vmem:[%s3 + $0x10] sm:$0xff] %v103
  %112 = vst [vmem:[%s3 + $0x18] sm:$0xff] %v104
  %113 = vst [vmem:[%s3 + $0x20] sm:$0xff] %v105
  %114 = vst [vmem:[%s3 + $0x28] sm:$0xff] %v106
  %115 = vst [vmem:[%s3 + $0x30] sm:$0xff] %v107
  %116 = vst [vmem:[%s3 + $0x38] sm:$0xff] %v108
  // Predicated region
  $region14: #{basic_block_inplace.3} parent=0 // pred_check
    _
  $region15: #{basic_block_inplace.3} parent=0 // pred_check_branch
    %118 = sbr.rel (0) target = $region17
  $region16: #{basic_block_inplace.3} parent=0 // pred_region
    _
  $region17: #{basic_block_inplace.3} parent=0 // pred_fallthru
    _
  // Predicated region
  $region18: #{basic_block_inplace.3} parent=0 // pred_check
    _
  $region19: #{basic_block_inplace.3} parent=0 // pred_check_branch
    %120 = sbr.rel (0) target = $region21
  $region20: #{basic_block_inplace.3} parent=0 // pred_region
    _
  $region21: #{basic_block_inplace.3} parent=0 // pred_fallthru
    _

// kernel: basic_block_inplace.5
$region0: #{basic_block_inplace.5}
  #allocation0 [shape = 'u32[]', space=smem, size = 0x4, offset = 0x4, fixed_abs, tag = 'smem constant byte address 0x4 - core index']
  #allocation1 [shape = 'u32[144,128]{1,0:T(1,128)}', space=vmem, size = 0x12000, scoped, tag = 'internal scratch']
  %s0 = inlined_call_operand.vmem [shape: f32[2,256,512], index: 0, kind: input, shape index: {}]
  %s1 = inlined_call_operand.vmem [shape: f32[8,256], index: 1, kind: input, shape index: {}]
  %s2 = inlined_call_operand.vmem [shape: f32[8,1], index: 2, kind: input, shape index: {}]
  %s3 = inlined_call_operand.vmem [shape: f32[2,8,512], index: 3, kind: input, shape index: {}]
  %s4 = inlined_call_operand.vmem [shape: f32[2,8,512], index: 4, kind: output, shape index: {}]
  %s5 = sld [smem:[#allocation0]]
  $region26: #{basic_block_inplace.5} parent=0
    _
  %s7 = ssub.s32 1, %s5
  %s8 = scalar_select 0, %s7, %s5
  // Predicated region
  $region2: #{basic_block_inplace.5} parent=0 // pred_check
    _
  $region3: #{basic_block_inplace.5} parent=0 // pred_check_branch
    %10 = sbr.rel (0) target = $region5
  $region4: #{basic_block_inplace.5} parent=0 // pred_region
    _
  $region5: #{basic_block_inplace.5} parent=0 // pred_fallthru
    _
  // Predicated region
  $region6: #{basic_block_inplace.5} parent=0 // pred_check
    _
  $region7: #{basic_block_inplace.5} parent=0 // pred_check_branch
    %12 = sbr.rel (0) target = $region9
  $region8: #{basic_block_inplace.5} parent=0 // pred_region
    _
  $region9: #{basic_block_inplace.5} parent=0 // pred_fallthru
    _
  // Predicated region
  $region10: #{basic_block_inplace.5} parent=0 // pred_check
    _
  $region11: #{basic_block_inplace.5} parent=0 // pred_check_branch
    %14 = sbr.rel (0) target = $region13
  $region12: #{basic_block_inplace.5} parent=0 // pred_region
    _
  $region13: #{basic_block_inplace.5} parent=0 // pred_fallthru
    _
  // Predicated region
  $region14: #{basic_block_inplace.5} parent=0 // pred_check
    _
  $region15: #{basic_block_inplace.5} parent=0 // pred_check_branch
    %16 = sbr.rel (0) target = $region17
  $region16: #{basic_block_inplace.5} parent=0 // pred_region
    _
  $region17: #{basic_block_inplace.5} parent=0 // pred_fallthru
    _
  %v17 = vld [vmem:[%s1] sm:$0xff]
  %v18 = vld [vmem:[%s1 + $0x8] sm:$0xff]
  %v19 = vld [vmem:[%s2] sm:$0xff]
  %v20 = vld [vmem:[%s0] sm:$0xff]
  %v21 = vld [vmem:[%s0 + $0x8] sm:$0xff]
  %v22 = vld [vmem:[%s0 + $0x10] sm:$0xff]
  %v23 = vld [vmem:[%s0 + $0x18] sm:$0xff]
  %v24 = vld [vmem:[%s0 + $0x20] sm:$0xff]
  %v25 = vld [vmem:[%s0 + $0x28] sm:$0xff]
  %v26 = vld [vmem:[%s0 + $0x30] sm:$0xff]
  %v27 = vld [vmem:[%s0 + $0x38] sm:$0xff]
  %v28 = vld [vmem:[%s0 + $0x40] sm:$0xff]
  %v29 = vld [vmem:[%s0 + $0x48] sm:$0xff]
  %v30 = vld [vmem:[%s0 + $0x50] sm:$0xff]
  %v31 = vld [vmem:[%s0 + $0x58] sm:$0xff]
  %v32 = vld [vmem:[%s0 + $0x60] sm:$0xff]
  %v33 = vld [vmem:[%s0 + $0x68] sm:$0xff]
  %v34 = vld [vmem:[%s0 + $0x70] sm:$0xff]
  %v35 = vld [vmem:[%s0 + $0x78] sm:$0xff]
  %v36 = vld [vmem:[%s0 + $0x80] sm:$0xff]
  %v37 = vld [vmem:[%s0 + $0x88] sm:$0xff]
  %v38 = vld [vmem:[%s0 + $0x90] sm:$0xff]
  %v39 = vld [vmem:[%s0 + $0x98] sm:$0xff]
  %v40 = vld [vmem:[%s0 + $0xa0] sm:$0xff]
  %v41 = vld [vmem:[%s0 + $0xa8] sm:$0xff]
  %v42 = vld [vmem:[%s0 + $0xb0] sm:$0xff]
  %v43 = vld [vmem:[%s0 + $0xb8] sm:$0xff]
  %v44 = vld [vmem:[%s0 + $0xc0] sm:$0xff]
  %v45 = vld [vmem:[%s0 + $0xc8] sm:$0xff]
  %v46 = vld [vmem:[%s0 + $0xd0] sm:$0xff]
  %v47 = vld [vmem:[%s0 + $0xd8] sm:$0xff]
  %v48 = vld [vmem:[%s0 + $0xe0] sm:$0xff]
  %v49 = vld [vmem:[%s0 + $0xe8] sm:$0xff]
  %v50 = vld [vmem:[%s0 + $0xf0] sm:$0xff]
  %v51 = vld [vmem:[%s0 + $0xf8] sm:$0xff]
  %v52 = vld [vmem:[%s0 + $0x100] sm:$0xff]
  %v53 = vld [vmem:[%s0 + $0x108] sm:$0xff]
  %v54 = vld [vmem:[%s0 + $0x110] sm:$0xff]
  %v55 = vld [vmem:[%s0 + $0x118] sm:$0xff]
  %v56 = vld [vmem:[%s0 + $0x120] sm:$0xff]
  %v57 = vld [vmem:[%s0 + $0x128] sm:$0xff]
  %v58 = vld [vmem:[%s0 + $0x130] sm:$0xff]
  %v59 = vld [vmem:[%s0 + $0x138] sm:$0xff]
  %v60 = vld [vmem:[%s0 + $0x140] sm:$0xff]
  %v61 = vld [vmem:[%s0 + $0x148] sm:$0xff]
  %v62 = vld [vmem:[%s0 + $0x150] sm:$0xff]
  %v63 = vld [vmem:[%s0 + $0x158] sm:$0xff]
  %v64 = vld [vmem:[%s0 + $0x160] sm:$0xff]
  %v65 = vld [vmem:[%s0 + $0x168] sm:$0xff]
  %v66 = vld [vmem:[%s0 + $0x170] sm:$0xff]
  %v67 = vld [vmem:[%s0 + $0x178] sm:$0xff]
  %v68 = vld [vmem:[%s0 + $0x180] sm:$0xff]
  %v69 = vld [vmem:[%s0 + $0x188] sm:$0xff]
  %v70 = vld [vmem:[%s0 + $0x190] sm:$0xff]
  %v71 = vld [vmem:[%s0 + $0x198] sm:$0xff]
  %v72 = vld [vmem:[%s0 + $0x1a0] sm:$0xff]
  %v73 = vld [vmem:[%s0 + $0x1a8] sm:$0xff]
  %v74 = vld [vmem:[%s0 + $0x1b0] sm:$0xff]
  %v75 = vld [vmem:[%s0 + $0x1b8] sm:$0xff]
  %v76 = vld [vmem:[%s0 + $0x1c0] sm:$0xff]
  %v77 = vld [vmem:[%s0 + $0x1c8] sm:$0xff]
  %v78 = vld [vmem:[%s0 + $0x1d0] sm:$0xff]
  %v79 = vld [vmem:[%s0 + $0x1d8] sm:$0xff]
  %v80 = vld [vmem:[%s0 + $0x1e0] sm:$0xff]
  %v81 = vld [vmem:[%s0 + $0x1e8] sm:$0xff]
  %v82 = vld [vmem:[%s0 + $0x1f0] sm:$0xff]
  %v83 = vld [vmem:[%s0 + $0x1f8] sm:$0xff]
  %v84 = vld [vmem:[%s0 + $0x200] sm:$0xff]
  %v85 = vld [vmem:[%s0 + $0x208] sm:$0xff]
  %v86 = vld [vmem:[%s0 + $0x210] sm:$0xff]
  %v87 = vld [vmem:[%s0 + $0x218] sm:$0xff]
  %v88 = vld [vmem:[%s0 + $0x220] sm:$0xff]
  %v89 = vld [vmem:[%s0 + $0x228] sm:$0xff]
  %v90 = vld [vmem:[%s0 + $0x230] sm:$0xff]
  %v91 = vld [vmem:[%s0 + $0x238] sm:$0xff]
  %v92 = vld [vmem:[%s0 + $0x240] sm:$0xff]
  %v93 = vld [vmem:[%s0 + $0x248] sm:$0xff]
  %v94 = vld [vmem:[%s0 + $0x250] sm:$0xff]
  %v95 = vld [vmem:[%s0 + $0x258] sm:$0xff]
  %v96 = vld [vmem:[%s0 + $0x260] sm:$0xff]
  %v97 = vld [vmem:[%s0 + $0x268] sm:$0xff]
  %v98 = vld [vmem:[%s0 + $0x270] sm:$0xff]
  %v99 = vld [vmem:[%s0 + $0x278] sm:$0xff]
  %v100 = vld [vmem:[%s0 + $0x280] sm:$0xff]
  %v101 = vld [vmem:[%s0 + $0x288] sm:$0xff]
  %v102 = vld [vmem:[%s0 + $0x290] sm:$0xff]
  %v103 = vld [vmem:[%s0 + $0x298] sm:$0xff]
  %v104 = vld [vmem:[%s0 + $0x2a0] sm:$0xff]
  %v105 = vld [vmem:[%s0 + $0x2a8] sm:$0xff]
  %v106 = vld [vmem:[%s0 + $0x2b0] sm:$0xff]
  %v107 = vld [vmem:[%s0 + $0x2b8] sm:$0xff]
  %v108 = vld [vmem:[%s0 + $0x2c0] sm:$0xff]
  %v109 = vld [vmem:[%s0 + $0x2c8] sm:$0xff]
  %v110 = vld [vmem:[%s0 + $0x2d0] sm:$0xff]
  %v111 = vld [vmem:[%s0 + $0x2d8] sm:$0xff]
  %v112 = vld [vmem:[%s0 + $0x2e0] sm:$0xff]
  %v113 = vld [vmem:[%s0 + $0x2e8] sm:$0xff]
  %v114 = vld [vmem:[%s0 + $0x2f0] sm:$0xff]
  %v115 = vld [vmem:[%s0 + $0x2f8] sm:$0xff]
  %v116 = vld [vmem:[%s0 + $0x300] sm:$0xff]
  %v117 = vld [vmem:[%s0 + $0x308] sm:$0xff]
  %v118 = vld [vmem:[%s0 + $0x310] sm:$0xff]
  %v119 = vld [vmem:[%s0 + $0x318] sm:$0xff]
  %v120 = vld [vmem:[%s0 + $0x320] sm:$0xff]
  %v121 = vld [vmem:[%s0 + $0x328] sm:$0xff]
  %v122 = vld [vmem:[%s0 + $0x330] sm:$0xff]
  %v123 = vld [vmem:[%s0 + $0x338] sm:$0xff]
  %v124 = vld [vmem:[%s0 + $0x340] sm:$0xff]
  %v125 = vld [vmem:[%s0 + $0x348] sm:$0xff]
  %v126 = vld [vmem:[%s0 + $0x350] sm:$0xff]
  %v127 = vld [vmem:[%s0 + $0x358] sm:$0xff]
  %v128 = vld [vmem:[%s0 + $0x360] sm:$0xff]
  %v129 = vld [vmem:[%s0 + $0x368] sm:$0xff]
  %v130 = vld [vmem:[%s0 + $0x370] sm:$0xff]
  %v131 = vld [vmem:[%s0 + $0x378] sm:$0xff]
  %v132 = vld [vmem:[%s0 + $0x380] sm:$0xff]
  %v133 = vld [vmem:[%s0 + $0x388] sm:$0xff]
  %v134 = vld [vmem:[%s0 + $0x390] sm:$0xff]
  %v135 = vld [vmem:[%s0 + $0x398] sm:$0xff]
  %v136 = vld [vmem:[%s0 + $0x3a0] sm:$0xff]
  %v137 = vld [vmem:[%s0 + $0x3a8] sm:$0xff]
  %v138 = vld [vmem:[%s0 + $0x3b0] sm:$0xff]
  %v139 = vld [vmem:[%s0 + $0x3b8] sm:$0xff]
  %v140 = vld [vmem:[%s0 + $0x3c0] sm:$0xff]
  %v141 = vld [vmem:[%s0 + $0x3c8] sm:$0xff]
  %v142 = vld [vmem:[%s0 + $0x3d0] sm:$0xff]
  %v143 = vld [vmem:[%s0 + $0x3d8] sm:$0xff]
  %v144 = vld [vmem:[%s0 + $0x3e0] sm:$0xff]
  %v145 = vld [vmem:[%s0 + $0x3e8] sm:$0xff]
  %v146 = vld [vmem:[%s0 + $0x3f0] sm:$0xff]
  %v147 = vld [vmem:[%s0 + $0x3f8] sm:$0xff]
  %149 = vset.pattern.permute.xlu0 0
  %150 = vperm.xlu0 %149, %v19
  %v151 = vpop.permute.xlu0 %150
  %153 = vmatprep.subr.mxu0 %v21
  %154 = vmatpush1.msra.mxu0 %v20
  %155 = vmatprep.subr.mxu0 %v25
  %156 = vmatpush1.msra.mxu0 %v24
  %157 = vmatprep.subr.mxu0 %v29
  %158 = vmatpush1.msra.mxu0 %v28
  %159 = vmatprep.subr.mxu0 %v33
  %160 = vmatpush1.msra.mxu0 %v32
  %161 = vmatprep.subr.mxu0 %v37
  %162 = vmatpush1.msra.mxu0 %v36
  %163 = vmatprep.subr.mxu0 %v41
  %164 = vmatpush1.msra.mxu0 %v40
  %165 = vmatprep.subr.mxu0 %v45
  %166 = vmatpush1.msra.mxu0 %v44
  %167 = vmatprep.subr.mxu0 %v49
  %168 = vmatpush1.msra.mxu0 %v48
  %169 = vmatprep.subr.mxu0 %v53
  %170 = vmatpush1.msra.mxu0 %v52
  %171 = vmatprep.subr.mxu0 %v57
  %172 = vmatpush1.msra.mxu0 %v56
  %173 = vmatprep.subr.mxu0 %v61
  %174 = vmatpush1.msra.mxu0 %v60
  %175 = vmatprep.subr.mxu0 %v65
  %176 = vmatpush1.msra.mxu0 %v64
  %177 = vmatprep.subr.mxu0 %v69
  %178 = vmatpush1.msra.mxu0 %v68
  %179 = vmatprep.subr.mxu0 %v73
  %180 = vmatpush1.msra.mxu0 %v72
  %181 = vmatprep.subr.mxu0 %v77
  %182 = vmatpush1.msra.mxu0 %v76
  %183 = vmatprep.subr.mxu0 %v81
  %184 = vmatpush1.msra.mxu0 %v80
  %185 = vmatprep.subr.mxu0 %v85
  %186 = vmatpush1.msra.mxu0 %v84
  %187 = vmatprep.subr.mxu0 %v89
  %188 = vmatpush1.msra.mxu0 %v88
  %189 = vmatprep.subr.mxu0 %v93
  %190 = vmatpush1.msra.mxu0 %v92
  %191 = vmatprep.subr.mxu0 %v97
  %192 = vmatpush1.msra.mxu0 %v96
  %193 = vmatprep.subr.mxu0 %v101
  %194 = vmatpush1.msra.mxu0 %v100
  %195 = vmatprep.subr.mxu0 %v105
  %196 = vmatpush1.msra.mxu0 %v104
  %197 = vmatprep.subr.mxu0 %v109
  %198 = vmatpush1.msra.mxu0 %v108
  %199 = vmatprep.subr.mxu0 %v113
  %200 = vmatpush1.msra.mxu0 %v112
  %201 = vmatprep.subr.mxu0 %v117
  %202 = vmatpush1.msra.mxu0 %v116
  %203 = vmatprep.subr.mxu0 %v121
  %204 = vmatpush1.msra.mxu0 %v120
  %205 = vmatprep.subr.mxu0 %v125
  %206 = vmatpush1.msra.mxu0 %v124
  %207 = vmatprep.subr.mxu0 %v129
  %208 = vmatpush1.msra.mxu0 %v128
  %209 = vmatprep.subr.mxu0 %v133
  %210 = vmatpush1.msra.mxu0 %v132
  %211 = vmatprep.subr.mxu0 %v137
  %212 = vmatpush1.msra.mxu0 %v136
  %213 = vmatprep.subr.mxu0 %v141
  %214 = vmatpush1.msra.mxu0 %v140
  %215 = vmatprep.subr.mxu0 %v145
  %216 = vmatpush1.msra.mxu0 %v144
  %217 = vmatprep.mubr.f32.mxu0 %v18
  %218 = vmatmul.mubr.f32.gmra.mrb[0].mxu0 %v17
  %v219 = vpop.f32.mrb[0].mxu0
  %v220 = vadd.f32 %v151, %v219
  %v221 = vpop.f32.mrb[0].mxu0
  %v222 = vadd.f32 %v151, %v221
  %223 = vdwg.mxu0
  %224 = vmatprep.subr.mxu0 %v23
  %225 = vmatpush1.msra.mxu0 %v22
  %226 = vmatprep.subr.mxu0 %v27
  %227 = vmatpush1.msra.mxu0 %v26
  %228 = vmatprep.subr.mxu0 %v31
  %229 = vmatpush1.msra.mxu0 %v30
  %230 = vmatprep.subr.mxu0 %v35
  %231 = vmatpush1.msra.mxu0 %v34
  %232 = vmatprep.subr.mxu0 %v39
  %233 = vmatpush1.msra.mxu0 %v38
  %234 = vmatprep.subr.mxu0 %v43
  %235 = vmatpush1.msra.mxu0 %v42
  %236 = vmatprep.subr.mxu0 %v47
  %237 = vmatpush1.msra.mxu0 %v46
  %238 = vmatprep.subr.mxu0 %v51
  %239 = vmatpush1.msra.mxu0 %v50
  %240 = vmatprep.subr.mxu0 %v55
  %241 = vmatpush1.msra.mxu0 %v54
  %242 = vmatprep.subr.mxu0 %v59
  %243 = vmatpush1.msra.mxu0 %v58
  %244 = vmatprep.subr.mxu0 %v63
  %245 = vmatpush1.msra.mxu0 %v62
  %246 = vmatprep.subr.mxu0 %v67
  %247 = vmatpush1.msra.mxu0 %v66
  %248 = vmatprep.subr.mxu0 %v71
  %249 = vmatpush1.msra.mxu0 %v70
  %250 = vmatprep.subr.mxu0 %v75
  %251 = vmatpush1.msra.mxu0 %v74
  %252 = vmatprep.subr.mxu0 %v79
  %253 = vmatpush1.msra.mxu0 %v78
  %254 = vmatprep.subr.mxu0 %v83
  %255 = vmatpush1.msra.mxu0 %v82
  %256 = vmatprep.subr.mxu0 %v87
  %257 = vmatpush1.msra.mxu0 %v86
  %258 = vmatprep.subr.mxu0 %v91
  %259 = vmatpush1.msra.mxu0 %v90
  %260 = vmatprep.subr.mxu0 %v95
  %261 = vmatpush1.msra.mxu0 %v94
  %262 = vmatprep.subr.mxu0 %v99
  %263 = vmatpush1.msra.mxu0 %v98
  %264 = vmatprep.subr.mxu0 %v103
  %265 = vmatpush1.msra.mxu0 %v102
  %266 = vmatprep.subr.mxu0 %v107
  %267 = vmatpush1.msra.mxu0 %v106
  %268 = vmatprep.subr.mxu0 %v111
  %269 = vmatpush1.msra.mxu0 %v110
  %270 = vmatprep.subr.mxu0 %v115
  %271 = vmatpush1.msra.mxu0 %v114
  %272 = vmatprep.subr.mxu0 %v119
  %273 = vmatpush1.msra.mxu0 %v118
  %274 = vmatprep.subr.mxu0 %v123
  %275 = vmatpush1.msra.mxu0 %v122
  %276 = vmatprep.subr.mxu0 %v127
  %277 = vmatpush1.msra.mxu0 %v126
  %278 = vmatprep.subr.mxu0 %v131
  %279 = vmatpush1.msra.mxu0 %v130
  %280 = vmatprep.subr.mxu0 %v135
  %281 = vmatpush1.msra.mxu0 %v134
  %282 = vmatprep.subr.mxu0 %v139
  %283 = vmatpush1.msra.mxu0 %v138
  %284 = vmatprep.subr.mxu0 %v143
  %285 = vmatpush1.msra.mxu0 %v142
  %286 = vmatprep.subr.mxu0 %v147
  %287 = vmatpush1.msra.mxu0 %v146
  %288 = vmatprep.mubr.f32.mxu0 %v18
  %289 = vmatmul.mubr.f32.gmra.mrb[0].mxu0 %v17
  %v290 = vpop.f32.mrb[0].mxu0
  %v291 = vadd.f32 %v151, %v290
  %v292 = vpop.f32.mrb[0].mxu0
  %v293 = vadd.f32 %v151, %v292
  %294 = vdwg.mxu0
  %v295 = vld [vmem:[%s3] sm:$0xff]
  %v296 = vld [vmem:[%s3 + $0x8] sm:$0xff]
  %v297 = vld [vmem:[%s3 + $0x10] sm:$0xff]
  %v298 = vld [vmem:[%s3 + $0x18] sm:$0xff]
  %v299 = vadd.f32 %v220, %v295
  %v300 = vadd.f32 %v222, %v296
  %v301 = vadd.f32 %v291, %v297
  %v302 = vadd.f32 %v293, %v298
  %303 = vst [vmem:[%s4] sm:$0xff] %v299
  %304 = vst [vmem:[%s4 + $0x8] sm:$0xff] %v300
  %305 = vst [vmem:[%s4 + $0x10] sm:$0xff] %v301
  %306 = vst [vmem:[%s4 + $0x18] sm:$0xff] %v302
  %s307 = scalar_lea.vmem %s0, 1024
  %v308 = vld [vmem:[%s307] sm:$0xff]
  %v309 = vld [vmem:[%s307 + $0x8] sm:$0xff]
  %v310 = vld [vmem:[%s307 + $0x10] sm:$0xff]
  %v311 = vld [vmem:[%s307 + $0x18] sm:$0xff]
  %v312 = vld [vmem:[%s307 + $0x20] sm:$0xff]
  %v313 = vld [vmem:[%s307 + $0x28] sm:$0xff]
  %v314 = vld [vmem:[%s307 + $0x30] sm:$0xff]
  %v315 = vld [vmem:[%s307 + $0x38] sm:$0xff]
  %v316 = vld [vmem:[%s307 + $0x40] sm:$0xff]
  %v317 = vld [vmem:[%s307 + $0x48] sm:$0xff]
  %v318 = vld [vmem:[%s307 + $0x50] sm:$0xff]
  %v319 = vld [vmem:[%s307 + $0x58] sm:$0xff]
  %v320 = vld [vmem:[%s307 + $0x60] sm:$0xff]
  %v321 = vld [vmem:[%s307 + $0x68] sm:$0xff]
  %v322 = vld [vmem:[%s307 + $0x70] sm:$0xff]
  %v323 = vld [vmem:[%s307 + $0x78] sm:$0xff]
  %v324 = vld [vmem:[%s307 + $0x80] sm:$0xff]
  %v325 = vld [vmem:[%s307 + $0x88] sm:$0xff]
  %v326 = vld [vmem:[%s307 + $0x90] sm:$0xff]
  %v327 = vld [vmem:[%s307 + $0x98] sm:$0xff]
  %v328 = vld [vmem:[%s307 + $0xa0] sm:$0xff]
  %v329 = vld [vmem:[%s307 + $0xa8] sm:$0xff]
  %v330 = vld [vmem:[%s307 + $0xb0] sm:$0xff]
  %v331 = vld [vmem:[%s307 + $0xb8] sm:$0xff]
  %v332 = vld [vmem:[%s307 + $0xc0] sm:$0xff]
  %v333 = vld [vmem:[%s307 + $0xc8] sm:$0xff]
  %v334 = vld [vmem:[%s307 + $0xd0] sm:$0xff]
  %v335 = vld [vmem:[%s307 + $0xd8] sm:$0xff]
  %v336 = vld [vmem:[%s307 + $0xe0] sm:$0xff]
  %v337 = vld [vmem:[%s307 + $0xe8] sm:$0xff]
  %v338 = vld [vmem:[%s307 + $0xf0] sm:$0xff]
  %v339 = vld [vmem:[%s307 + $0xf8] sm:$0xff]
  %v340 = vld [vmem:[%s307 + $0x100] sm:$0xff]
  %v341 = vld [vmem:[%s307 + $0x108] sm:$0xff]
  %v342 = vld [vmem:[%s307 + $0x110] sm:$0xff]
  %v343 = vld [vmem:[%s307 + $0x118] sm:$0xff]
  %v344 = vld [vmem:[%s307 + $0x120] sm:$0xff]
  %v345 = vld [vmem:[%s307 + $0x128] sm:$0xff]
  %v346 = vld [vmem:[%s307 + $0x130] sm:$0xff]
  %v347 = vld [vmem:[%s307 + $0x138] sm:$0xff]
  %v348 = vld [vmem:[%s307 + $0x140] sm:$0xff]
  %v349 = vld [vmem:[%s307 + $0x148] sm:$0xff]
  %v350 = vld [vmem:[%s307 + $0x150] sm:$0xff]
  %v351 = vld [vmem:[%s307 + $0x158] sm:$0xff]
  %v352 = vld [vmem:[%s307 + $0x160] sm:$0xff]
  %v353 = vld [vmem:[%s307 + $0x168] sm:$0xff]
  %v354 = vld [vmem:[%s307 + $0x170] sm:$0xff]
  %v355 = vld [vmem:[%s307 + $0x178] sm:$0xff]
  %v356 = vld [vmem:[%s307 + $0x180] sm:$0xff]
  %v357 = vld [vmem:[%s307 + $0x188] sm:$0xff]
  %v358 = vld [vmem:[%s307 + $0x190] sm:$0xff]
  %v359 = vld [vmem:[%s307 + $0x198] sm:$0xff]
  %v360 = vld [vmem:[%s307 + $0x1a0] sm:$0xff]
  %v361 = vld [vmem:[%s307 + $0x1a8] sm:$0xff]
  %v362 = vld [vmem:[%s307 + $0x1b0] sm:$0xff]
  %v363 = vld [vmem:[%s307 + $0x1b8] sm:$0xff]
  %v364 = vld [vmem:[%s307 + $0x1c0] sm:$0xff]
  %v365 = vld [vmem:[%s307 + $0x1c8] sm:$0xff]
  %v366 = vld [vmem:[%s307 + $0x1d0] sm:$0xff]
  %v367 = vld [vmem:[%s307 + $0x1d8] sm:$0xff]
  %v368 = vld [vmem:[%s307 + $0x1e0] sm:$0xff]
  %v369 = vld [vmem:[%s307 + $0x1e8] sm:$0xff]
  %v370 = vld [vmem:[%s307 + $0x1f0] sm:$0xff]
  %v371 = vld [vmem:[%s307 + $0x1f8] sm:$0xff]
  %v372 = vld [vmem:[%s307 + $0x200] sm:$0xff]
  %v373 = vld [vmem:[%s307 + $0x208] sm:$0xff]
  %v374 = vld [vmem:[%s307 + $0x210] sm:$0xff]
  %v375 = vld [vmem:[%s307 + $0x218] sm:$0xff]
  %v376 = vld [vmem:[%s307 + $0x220] sm:$0xff]
  %v377 = vld [vmem:[%s307 + $0x228] sm:$0xff]
  %v378 = vld [vmem:[%s307 + $0x230] sm:$0xff]
  %v379 = vld [vmem:[%s307 + $0x238] sm:$0xff]
  %v380 = vld [vmem:[%s307 + $0x240] sm:$0xff]
  %v381 = vld [vmem:[%s307 + $0x248] sm:$0xff]
  %v382 = vld [vmem:[%s307 + $0x250] sm:$0xff]
  %v383 = vld [vmem:[%s307 + $0x258] sm:$0xff]
  %v384 = vld [vmem:[%s307 + $0x260] sm:$0xff]
  %v385 = vld [vmem:[%s307 + $0x268] sm:$0xff]
  %v386 = vld [vmem:[%s307 + $0x270] sm:$0xff]
  %v387 = vld [vmem:[%s307 + $0x278] sm:$0xff]
  %v388 = vld [vmem:[%s307 + $0x280] sm:$0xff]
  %v389 = vld [vmem:[%s307 + $0x288] sm:$0xff]
  %v390 = vld [vmem:[%s307 + $0x290] sm:$0xff]
  %v391 = vld [vmem:[%s307 + $0x298] sm:$0xff]
  %v392 = vld [vmem:[%s307 + $0x2a0] sm:$0xff]
  %v393 = vld [vmem:[%s307 + $0x2a8] sm:$0xff]
  %v394 = vld [vmem:[%s307 + $0x2b0] sm:$0xff]
  %v395 = vld [vmem:[%s307 + $0x2b8] sm:$0xff]
  %v396 = vld [vmem:[%s307 + $0x2c0] sm:$0xff]
  %v397 = vld [vmem:[%s307 + $0x2c8] sm:$0xff]
  %v398 = vld [vmem:[%s307 + $0x2d0] sm:$0xff]
  %v399 = vld [vmem:[%s307 + $0x2d8] sm:$0xff]
  %v400 = vld [vmem:[%s307 + $0x2e0] sm:$0xff]
  %v401 = vld [vmem:[%s307 + $0x2e8] sm:$0xff]
  %v402 = vld [vmem:[%s307 + $0x2f0] sm:$0xff]
  %v403 = vld [vmem:[%s307 + $0x2f8] sm:$0xff]
  %v404 = vld [vmem:[%s307 + $0x300] sm:$0xff]
  %v405 = vld [vmem:[%s307 + $0x308] sm:$0xff]
  %v406 = vld [vmem:[%s307 + $0x310] sm:$0xff]
  %v407 = vld [vmem:[%s307 + $0x318] sm:$0xff]
  %v408 = vld [vmem:[%s307 + $0x320] sm:$0xff]
  %v409 = vld [vmem:[%s307 + $0x328] sm:$0xff]
  %v410 = vld [vmem:[%s307 + $0x330] sm:$0xff]
  %v411 = vld [vmem:[%s307 + $0x338] sm:$0xff]
  %v412 = vld [vmem:[%s307 + $0x340] sm:$0xff]
  %v413 = vld [vmem:[%s307 + $0x348] sm:$0xff]
  %v414 = vld [vmem:[%s307 + $0x350] sm:$0xff]
  %v415 = vld [vmem:[%s307 + $0x358] sm:$0xff]
  %v416 = vld [vmem:[%s307 + $0x360] sm:$0xff]
  %v417 = vld [vmem:[%s307 + $0x368] sm:$0xff]
  %v418 = vld [vmem:[%s307 + $0x370] sm:$0xff]
  %v419 = vld [vmem:[%s307 + $0x378] sm:$0xff]
  %v420 = vld [vmem:[%s307 + $0x380] sm:$0xff]
  %v421 = vld [vmem:[%s307 + $0x388] sm:$0xff]
  %v422 = vld [vmem:[%s307 + $0x390] sm:$0xff]
  %v423 = vld [vmem:[%s307 + $0x398] sm:$0xff]
  %v424 = vld [vmem:[%s307 + $0x3a0] sm:$0xff]
  %v425 = vld [vmem:[%s307 + $0x3a8] sm:$0xff]
  %v426 = vld [vmem:[%s307 + $0x3b0] sm:$0xff]
  %v427 = vld [vmem:[%s307 + $0x3b8] sm:$0xff]
  %v428 = vld [vmem:[%s307 + $0x3c0] sm:$0xff]
  %v429 = vld [vmem:[%s307 + $0x3c8] sm:$0xff]
  %v430 = vld [vmem:[%s307 + $0x3d0] sm:$0xff]
  %v431 = vld [vmem:[%s307 + $0x3d8] sm:$0xff]
  %v432 = vld [vmem:[%s307 + $0x3e0] sm:$0xff]
  %v433 = vld [vmem:[%s307 + $0x3e8] sm:$0xff]
  %v434 = vld [vmem:[%s307 + $0x3f0] sm:$0xff]
  %v435 = vld [vmem:[%s307 + $0x3f8] sm:$0xff]
  %436 = vmatprep.subr.mxu0 %v309
  %437 = vmatpush1.msra.mxu0 %v308
  %438 = vmatprep.subr.mxu0 %v313
  %439 = vmatpush1.msra.mxu0 %v312
  %440 = vmatprep.subr.mxu0 %v317
  %441 = vmatpush1.msra.mxu0 %v316
  %442 = vmatprep.subr.mxu0 %v321
  %443 = vmatpush1.msra.mxu0 %v320
  %444 = vmatprep.subr.mxu0 %v325
  %445 = vmatpush1.msra.mxu0 %v324
  %446 = vmatprep.subr.mxu0 %v329
  %447 = vmatpush1.msra.mxu0 %v328
  %448 = vmatprep.subr.mxu0 %v333
  %449 = vmatpush1.msra.mxu0 %v332
  %450 = vmatprep.subr.mxu0 %v337
  %451 = vmatpush1.msra.mxu0 %v336
  %452 = vmatprep.subr.mxu0 %v341
  %453 = vmatpush1.msra.mxu0 %v340
  %454 = vmatprep.subr.mxu0 %v345
  %455 = vmatpush1.msra.mxu0 %v344
  %456 = vmatprep.subr.mxu0 %v349
  %457 = vmatpush1.msra.mxu0 %v348
  %458 = vmatprep.subr.mxu0 %v353
  %459 = vmatpush1.msra.mxu0 %v352
  %460 = vmatprep.subr.mxu0 %v357
  %461 = vmatpush1.msra.mxu0 %v356
  %462 = vmatprep.subr.mxu0 %v361
  %463 = vmatpush1.msra.mxu0 %v360
  %464 = vmatprep.subr.mxu0 %v365
  %465 = vmatpush1.msra.mxu0 %v364
  %466 = vmatprep.subr.mxu0 %v369
  %467 = vmatpush1.msra.mxu0 %v368
  %468 = vmatprep.subr.mxu0 %v373
  %469 = vmatpush1.msra.mxu0 %v372
  %470 = vmatprep.subr.mxu0 %v377
  %471 = vmatpush1.msra.mxu0 %v376
  %472 = vmatprep.subr.mxu0 %v381
  %473 = vmatpush1.msra.mxu0 %v380
  %474 = vmatprep.subr.mxu0 %v385
  %475 = vmatpush1.msra.mxu0 %v384
  %476 = vmatprep.subr.mxu0 %v389
  %477 = vmatpush1.msra.mxu0 %v388
  %478 = vmatprep.subr.mxu0 %v393
  %479 = vmatpush1.msra.mxu0 %v392
  %480 = vmatprep.subr.mxu0 %v397
  %481 = vmatpush1.msra.mxu0 %v396
  %482 = vmatprep.subr.mxu0 %v401
  %483 = vmatpush1.msra.mxu0 %v400
  %484 = vmatprep.subr.mxu0 %v405
  %485 = vmatpush1.msra.mxu0 %v404
  %486 = vmatprep.subr.mxu0 %v409
  %487 = vmatpush1.msra.mxu0 %v408
  %488 = vmatprep.subr.mxu0 %v413
  %489 = vmatpush1.msra.mxu0 %v412
  %490 = vmatprep.subr.mxu0 %v417
  %491 = vmatpush1.msra.mxu0 %v416
  %492 = vmatprep.subr.mxu0 %v421
  %493 = vmatpush1.msra.mxu0 %v420
  %494 = vmatprep.subr.mxu0 %v425
  %495 = vmatpush1.msra.mxu0 %v424
  %496 = vmatprep.subr.mxu0 %v429
  %497 = vmatpush1.msra.mxu0 %v428
  %498 = vmatprep.subr.mxu0 %v433
  %499 = vmatpush1.msra.mxu0 %v432
  %500 = vmatprep.mubr.f32.mxu0 %v18
  %501 = vmatmul.mubr.f32.gmra.mrb[0].mxu0 %v17
  %v502 = vpop.f32.mrb[0].mxu0
  %v503 = vadd.f32 %v151, %v502
  %v504 = vpop.f32.mrb[0].mxu0
  %v505 = vadd.f32 %v151, %v504
  %506 = vdwg.mxu0
  %507 = vmatprep.subr.mxu0 %v311
  %508 = vmatpush1.msra.mxu0 %v310
  %509 = vmatprep.subr.mxu0 %v315
  %510 = vmatpush1.msra.mxu0 %v314
  %511 = vmatprep.subr.mxu0 %v319
  %512 = vmatpush1.msra.mxu0 %v318
  %513 = vmatprep.subr.mxu0 %v323
  %514 = vmatpush1.msra.mxu0 %v322
  %515 = vmatprep.subr.mxu0 %v327
  %516 = vmatpush1.msra.mxu0 %v326
  %517 = vmatprep.subr.mxu0 %v331
  %518 = vmatpush1.msra.mxu0 %v330
  %519 = vmatprep.subr.mxu0 %v335
  %520 = vmatpush1.msra.mxu0 %v334
  %521 = vmatprep.subr.mxu0 %v339
  %522 = vmatpush1.msra.mxu0 %v338
  %523 = vmatprep.subr.mxu0 %v343
  %524 = vmatpush1.msra.mxu0 %v342
  %525 = vmatprep.subr.mxu0 %v347
  %526 = vmatpush1.msra.mxu0 %v346
  %527 = vmatprep.subr.mxu0 %v351
  %528 = vmatpush1.msra.mxu0 %v350
  %529 = vmatprep.subr.mxu0 %v355
  %530 = vmatpush1.msra.mxu0 %v354
  %531 = vmatprep.subr.mxu0 %v359
  %532 = vmatpush1.msra.mxu0 %v358
  %533 = vmatprep.subr.mxu0 %v363
  %534 = vmatpush1.msra.mxu0 %v362
  %535 = vmatprep.subr.mxu0 %v367
  %536 = vmatpush1.msra.mxu0 %v366
  %537 = vmatprep.subr.mxu0 %v371
  %538 = vmatpush1.msra.mxu0 %v370
  %539 = vmatprep.subr.mxu0 %v375
  %540 = vmatpush1.msra.mxu0 %v374
  %541 = vmatprep.subr.mxu0 %v379
  %542 = vmatpush1.msra.mxu0 %v378
  %543 = vmatprep.subr.mxu0 %v383
  %544 = vmatpush1.msra.mxu0 %v382
  %545 = vmatprep.subr.mxu0 %v387
  %546 = vmatpush1.msra.mxu0 %v386
  %547 = vmatprep.subr.mxu0 %v391
  %548 = vmatpush1.msra.mxu0 %v390
  %549 = vmatprep.subr.mxu0 %v395
  %550 = vmatpush1.msra.mxu0 %v394
  %551 = vmatprep.subr.mxu0 %v399
  %552 = vmatpush1.msra.mxu0 %v398
  %553 = vmatprep.subr.mxu0 %v403
  %554 = vmatpush1.msra.mxu0 %v402
  %555 = vmatprep.subr.mxu0 %v407
  %556 = vmatpush1.msra.mxu0 %v406
  %557 = vmatprep.subr.mxu0 %v411
  %558 = vmatpush1.msra.mxu0 %v410
  %559 = vmatprep.subr.mxu0 %v415
  %560 = vmatpush1.msra.mxu0 %v414
  %561 = vmatprep.subr.mxu0 %v419
  %562 = vmatpush1.msra.mxu0 %v418
  %563 = vmatprep.subr.mxu0 %v423
  %564 = vmatpush1.msra.mxu0 %v422
  %565 = vmatprep.subr.mxu0 %v427
  %566 = vmatpush1.msra.mxu0 %v426
  %567 = vmatprep.subr.mxu0 %v431
  %568 = vmatpush1.msra.mxu0 %v430
  %569 = vmatprep.subr.mxu0 %v435
  %570 = vmatpush1.msra.mxu0 %v434
  %571 = vmatprep.mubr.f32.mxu0 %v18
  %572 = vmatmul.mubr.f32.gmra.mrb[0].mxu0 %v17
  %v573 = vpop.f32.mrb[0].mxu0
  %v574 = vadd.f32 %v151, %v573
  %v575 = vpop.f32.mrb[0].mxu0
  %v576 = vadd.f32 %v151, %v575
  %577 = vdwg.mxu0
  %s578 = scalar_lea.vmem %s3, 32
  %v579 = vld [vmem:[%s578] sm:$0xff]
  %v580 = vld [vmem:[%s578 + $0x8] sm:$0xff]
  %v581 = vld [vmem:[%s578 + $0x10] sm:$0xff]
  %v582 = vld [vmem:[%s578 + $0x18] sm:$0xff]
  %v583 = vadd.f32 %v503, %v579
  %v584 = vadd.f32 %v505, %v580
  %v585 = vadd.f32 %v574, %v581
  %v586 = vadd.f32 %v576, %v582
  %s587 = scalar_lea.vmem %s4, 32
  %588 = vst [vmem:[%s587] sm:$0xff] %v583
  %589 = vst [vmem:[%s587 + $0x8] sm:$0xff] %v584
  %590 = vst [vmem:[%s587 + $0x10] sm:$0xff] %v585
  %591 = vst [vmem:[%s587 + $0x18] sm:$0xff] %v586
  // Predicated region
  $region18: #{basic_block_inplace.5} parent=0 // pred_check
    _
  $region19: #{basic_block_inplace.5} parent=0 // pred_check_branch
    %593 = sbr.rel (0) target = $region21
  $region20: #{basic_block_inplace.5} parent=0 // pred_region
    _
  $region21: #{basic_block_inplace.5} parent=0 // pred_fallthru
    _
  // Predicated region
  $region22: #{basic_block_inplace.5} parent=0 // pred_check
    _
  $region23: #{basic_block_inplace.5} parent=0 // pred_check_branch
    %595 = sbr.rel (0) target = $region25
  $region24: #{basic_block_inplace.5} parent=0 // pred_region
    _
  $region25: #{basic_block_inplace.5} parent=0 // pred_fallthru
    _

// kernel: basic_block_inplace.4
$region0: #{basic_block_inplace.4}
  #allocation0 [shape = 'u32[]', space=smem, size = 0x4, offset = 0x4, fixed_abs, tag = 'smem constant byte address 0x4 - core index']
  #allocation1 [shape = 'u32[144,128]{1,0:T(1,128)}', space=vmem, size = 0x12000, scoped, tag = 'internal scratch']
  %s0 = inlined_call_operand.vmem [shape: f32[2,256,512], index: 0, kind: input, shape index: {}]
  %s1 = inlined_call_operand.vmem [shape: f32[8,256], index: 1, kind: input, shape index: {}]
  %s2 = inlined_call_operand.vmem [shape: f32[8,1], index: 2, kind: input, shape index: {}]
  %s3 = inlined_call_operand.vmem [shape: f32[8,1], index: 3, kind: input, shape index: {}]
  %s4 = inlined_call_operand.vmem [shape: f32[8,1], index: 4, kind: input, shape index: {}]
  %s5 = inlined_call_operand.vmem [shape: f32[2,8,512], index: 5, kind: output, shape index: {}]
  %s6 = sld [smem:[#allocation0]]
  $region30: #{basic_block_inplace.4} parent=0
    _
  %s8 = ssub.s32 1, %s6
  %s9 = scalar_select 0, %s8, %s6
  // Predicated region
  $region2: #{basic_block_inplace.4} parent=0 // pred_check
    _
  $region3: #{basic_block_inplace.4} parent=0 // pred_check_branch
    %11 = sbr.rel (0) target = $region5
  $region4: #{basic_block_inplace.4} parent=0 // pred_region
    _
  $region5: #{basic_block_inplace.4} parent=0 // pred_fallthru
    _
  // Predicated region
  $region6: #{basic_block_inplace.4} parent=0 // pred_check
    _
  $region7: #{basic_block_inplace.4} parent=0 // pred_check_branch
    %13 = sbr.rel (0) target = $region9
  $region8: #{basic_block_inplace.4} parent=0 // pred_region
    _
  $region9: #{basic_block_inplace.4} parent=0 // pred_fallthru
    _
  // Predicated region
  $region10: #{basic_block_inplace.4} parent=0 // pred_check
    _
  $region11: #{basic_block_inplace.4} parent=0 // pred_check_branch
    %15 = sbr.rel (0) target = $region13
  $region12: #{basic_block_inplace.4} parent=0 // pred_region
    _
  $region13: #{basic_block_inplace.4} parent=0 // pred_fallthru
    _
  // Predicated region
  $region14: #{basic_block_inplace.4} parent=0 // pred_check
    _
  $region15: #{basic_block_inplace.4} parent=0 // pred_check_branch
    %17 = sbr.rel (0) target = $region17
  $region16: #{basic_block_inplace.4} parent=0 // pred_region
    _
  $region17: #{basic_block_inplace.4} parent=0 // pred_fallthru
    _
  // Predicated region
  $region18: #{basic_block_inplace.4} parent=0 // pred_check
    _
  $region19: #{basic_block_inplace.4} parent=0 // pred_check_branch
    %19 = sbr.rel (0) target = $region21
  $region20: #{basic_block_inplace.4} parent=0 // pred_region
    _
  $region21: #{basic_block_inplace.4} parent=0 // pred_fallthru
    _
  %v20 = vld [vmem:[%s1] sm:$0xff]
  %v21 = vld [vmem:[%s1 + $0x8] sm:$0xff]
  %v22 = vld [vmem:[%s2] sm:$0xff]
  %v23 = vld [vmem:[%s0] sm:$0xff]
  %v24 = vld [vmem:[%s0 + $0x8] sm:$0xff]
  %v25 = vld [vmem:[%s0 + $0x10] sm:$0xff]
  %v26 = vld [vmem:[%s0 + $0x18] sm:$0xff]
  %v27 = vld [vmem:[%s0 + $0x20] sm:$0xff]
  %v28 = vld [vmem:[%s0 + $0x28] sm:$0xff]
  %v29 = vld [vmem:[%s0 + $0x30] sm:$0xff]
  %v30 = vld [vmem:[%s0 + $0x38] sm:$0xff]
  %v31 = vld [vmem:[%s0 + $0x40] sm:$0xff]
  %v32 = vld [vmem:[%s0 + $0x48] sm:$0xff]
  %v33 = vld [vmem:[%s0 + $0x50] sm:$0xff]
  %v34 = vld [vmem:[%s0 + $0x58] sm:$0xff]
  %v35 = vld [vmem:[%s0 + $0x60] sm:$0xff]
  %v36 = vld [vmem:[%s0 + $0x68] sm:$0xff]
  %v37 = vld [vmem:[%s0 + $0x70] sm:$0xff]
  %v38 = vld [vmem:[%s0 + $0x78] sm:$0xff]
  %v39 = vld [vmem:[%s0 + $0x80] sm:$0xff]
  %v40 = vld [vmem:[%s0 + $0x88] sm:$0xff]
  %v41 = vld [vmem:[%s0 + $0x90] sm:$0xff]
  %v42 = vld [vmem:[%s0 + $0x98] sm:$0xff]
  %v43 = vld [vmem:[%s0 + $0xa0] sm:$0xff]
  %v44 = vld [vmem:[%s0 + $0xa8] sm:$0xff]
  %v45 = vld [vmem:[%s0 + $0xb0] sm:$0xff]
  %v46 = vld [vmem:[%s0 + $0xb8] sm:$0xff]
  %v47 = vld [vmem:[%s0 + $0xc0] sm:$0xff]
  %v48 = vld [vmem:[%s0 + $0xc8] sm:$0xff]
  %v49 = vld [vmem:[%s0 + $0xd0] sm:$0xff]
  %v50 = vld [vmem:[%s0 + $0xd8] sm:$0xff]
  %v51 = vld [vmem:[%s0 + $0xe0] sm:$0xff]
  %v52 = vld [vmem:[%s0 + $0xe8] sm:$0xff]
  %v53 = vld [vmem:[%s0 + $0xf0] sm:$0xff]
  %v54 = vld [vmem:[%s0 + $0xf8] sm:$0xff]
  %v55 = vld [vmem:[%s0 + $0x100] sm:$0xff]
  %v56 = vld [vmem:[%s0 + $0x108] sm:$0xff]
  %v57 = vld [vmem:[%s0 + $0x110] sm:$0xff]
  %v58 = vld [vmem:[%s0 + $0x118] sm:$0xff]
  %v59 = vld [vmem:[%s0 + $0x120] sm:$0xff]
  %v60 = vld [vmem:[%s0 + $0x128] sm:$0xff]
  %v61 = vld [vmem:[%s0 + $0x130] sm:$0xff]
  %v62 = vld [vmem:[%s0 + $0x138] sm:$0xff]
  %v63 = vld [vmem:[%s0 + $0x140] sm:$0xff]
  %v64 = vld [vmem:[%s0 + $0x148] sm:$0xff]
  %v65 = vld [vmem:[%s0 + $0x150] sm:$0xff]
  %v66 = vld [vmem:[%s0 + $0x158] sm:$0xff]
  %v67 = vld [vmem:[%s0 + $0x160] sm:$0xff]
  %v68 = vld [vmem:[%s0 + $0x168] sm:$0xff]
  %v69 = vld [vmem:[%s0 + $0x170] sm:$0xff]
  %v70 = vld [vmem:[%s0 + $0x178] sm:$0xff]
  %v71 = vld [vmem:[%s0 + $0x180] sm:$0xff]
  %v72 = vld [vmem:[%s0 + $0x188] sm:$0xff]
  %v73 = vld [vmem:[%s0 + $0x190] sm:$0xff]
  %v74 = vld [vmem:[%s0 + $0x198] sm:$0xff]
  %v75 = vld [vmem:[%s0 + $0x1a0] sm:$0xff]
  %v76 = vld [vmem:[%s0 + $0x1a8] sm:$0xff]
  %v77 = vld [vmem:[%s0 + $0x1b0] sm:$0xff]
  %v78 = vld [vmem:[%s0 + $0x1b8] sm:$0xff]
  %v79 = vld [vmem:[%s0 + $0x1c0] sm:$0xff]
  %v80 = vld [vmem:[%s0 + $0x1c8] sm:$0xff]
  %v81 = vld [vmem:[%s0 + $0x1d0] sm:$0xff]
  %v82 = vld [vmem:[%s0 + $0x1d8] sm:$0xff]
  %v83 = vld [vmem:[%s0 + $0x1e0] sm:$0xff]
  %v84 = vld [vmem:[%s0 + $0x1e8] sm:$0xff]
  %v85 = vld [vmem:[%s0 + $0x1f0] sm:$0xff]
  %v86 = vld [vmem:[%s0 + $0x1f8] sm:$0xff]
  %v87 = vld [vmem:[%s0 + $0x200] sm:$0xff]
  %v88 = vld [vmem:[%s0 + $0x208] sm:$0xff]
  %v89 = vld [vmem:[%s0 + $0x210] sm:$0xff]
  %v90 = vld [vmem:[%s0 + $0x218] sm:$0xff]
  %v91 = vld [vmem:[%s0 + $0x220] sm:$0xff]
  %v92 = vld [vmem:[%s0 + $0x228] sm:$0xff]
  %v93 = vld [vmem:[%s0 + $0x230] sm:$0xff]
  %v94 = vld [vmem:[%s0 + $0x238] sm:$0xff]
  %v95 = vld [vmem:[%s0 + $0x240] sm:$0xff]
  %v96 = vld [vmem:[%s0 + $0x248] sm:$0xff]
  %v97 = vld [vmem:[%s0 + $0x250] sm:$0xff]
  %v98 = vld [vmem:[%s0 + $0x258] sm:$0xff]
  %v99 = vld [vmem:[%s0 + $0x260] sm:$0xff]
  %v100 = vld [vmem:[%s0 + $0x268] sm:$0xff]
  %v101 = vld [vmem:[%s0 + $0x270] sm:$0xff]
  %v102 = vld [vmem:[%s0 + $0x278] sm:$0xff]
  %v103 = vld [vmem:[%s0 + $0x280] sm:$0xff]
  %v104 = vld [vmem:[%s0 + $0x288] sm:$0xff]
  %v105 = vld [vmem:[%s0 + $0x290] sm:$0xff]
  %v106 = vld [vmem:[%s0 + $0x298] sm:$0xff]
  %v107 = vld [vmem:[%s0 + $0x2a0] sm:$0xff]
  %v108 = vld [vmem:[%s0 + $0x2a8] sm:$0xff]
  %v109 = vld [vmem:[%s0 + $0x2b0] sm:$0xff]
  %v110 = vld [vmem:[%s0 + $0x2b8] sm:$0xff]
  %v111 = vld [vmem:[%s0 + $0x2c0] sm:$0xff]
  %v112 = vld [vmem:[%s0 + $0x2c8] sm:$0xff]
  %v113 = vld [vmem:[%s0 + $0x2d0] sm:$0xff]
  %v114 = vld [vmem:[%s0 + $0x2d8] sm:$0xff]
  %v115 = vld [vmem:[%s0 + $0x2e0] sm:$0xff]
  %v116 = vld [vmem:[%s0 + $0x2e8] sm:$0xff]
  %v117 = vld [vmem:[%s0 + $0x2f0] sm:$0xff]
  %v118 = vld [vmem:[%s0 + $0x2f8] sm:$0xff]
  %v119 = vld [vmem:[%s0 + $0x300] sm:$0xff]
  %v120 = vld [vmem:[%s0 + $0x308] sm:$0xff]
  %v121 = vld [vmem:[%s0 + $0x310] sm:$0xff]
  %v122 = vld [vmem:[%s0 + $0x318] sm:$0xff]
  %v123 = vld [vmem:[%s0 + $0x320] sm:$0xff]
  %v124 = vld [vmem:[%s0 + $0x328] sm:$0xff]
  %v125 = vld [vmem:[%s0 + $0x330] sm:$0xff]
  %v126 = vld [vmem:[%s0 + $0x338] sm:$0xff]
  %v127 = vld [vmem:[%s0 + $0x340] sm:$0xff]
  %v128 = vld [vmem:[%s0 + $0x348] sm:$0xff]
  %v129 = vld [vmem:[%s0 + $0x350] sm:$0xff]
  %v130 = vld [vmem:[%s0 + $0x358] sm:$0xff]
  %v131 = vld [vmem:[%s0 + $0x360] sm:$0xff]
  %v132 = vld [vmem:[%s0 + $0x368] sm:$0xff]
  %v133 = vld [vmem:[%s0 + $0x370] sm:$0xff]
  %v134 = vld [vmem:[%s0 + $0x378] sm:$0xff]
  %v135 = vld [vmem:[%s0 + $0x380] sm:$0xff]
  %v136 = vld [vmem:[%s0 + $0x388] sm:$0xff]
  %v137 = vld [vmem:[%s0 + $0x390] sm:$0xff]
  %v138 = vld [vmem:[%s0 + $0x398] sm:$0xff]
  %v139 = vld [vmem:[%s0 + $0x3a0] sm:$0xff]
  %v140 = vld [vmem:[%s0 + $0x3a8] sm:$0xff]
  %v141 = vld [vmem:[%s0 + $0x3b0] sm:$0xff]
  %v142 = vld [vmem:[%s0 + $0x3b8] sm:$0xff]
  %v143 = vld [vmem:[%s0 + $0x3c0] sm:$0xff]
  %v144 = vld [vmem:[%s0 + $0x3c8] sm:$0xff]
  %v145 = vld [vmem:[%s0 + $0x3d0] sm:$0xff]
  %v146 = vld [vmem:[%s0 + $0x3d8] sm:$0xff]
  %v147 = vld [vmem:[%s0 + $0x3e0] sm:$0xff]
  %v148 = vld [vmem:[%s0 + $0x3e8] sm:$0xff]
  %v149 = vld [vmem:[%s0 + $0x3f0] sm:$0xff]
  %v150 = vld [vmem:[%s0 + $0x3f8] sm:$0xff]
  %152 = vset.pattern.permute.xlu0 0
  %153 = vperm.xlu0 %152, %v22
  %v154 = vpop.permute.xlu0 %153
  %156 = vmatprep.subr.mxu0 %v24
  %157 = vmatpush1.msra.mxu0 %v23
  %158 = vmatprep.subr.mxu0 %v28
  %159 = vmatpush1.msra.mxu0 %v27
  %160 = vmatprep.subr.mxu0 %v32
  %161 = vmatpush1.msra.mxu0 %v31
  %162 = vmatprep.subr.mxu0 %v36
  %163 = vmatpush1.msra.mxu0 %v35
  %164 = vmatprep.subr.mxu0 %v40
  %165 = vmatpush1.msra.mxu0 %v39
  %166 = vmatprep.subr.mxu0 %v44
  %167 = vmatpush1.msra.mxu0 %v43
  %168 = vmatprep.subr.mxu0 %v48
  %169 = vmatpush1.msra.mxu0 %v47
  %170 = vmatprep.subr.mxu0 %v52
  %171 = vmatpush1.msra.mxu0 %v51
  %172 = vmatprep.subr.mxu0 %v56
  %173 = vmatpush1.msra.mxu0 %v55
  %174 = vmatprep.subr.mxu0 %v60
  %175 = vmatpush1.msra.mxu0 %v59
  %176 = vmatprep.subr.mxu0 %v64
  %177 = vmatpush1.msra.mxu0 %v63
  %178 = vmatprep.subr.mxu0 %v68
  %179 = vmatpush1.msra.mxu0 %v67
  %180 = vmatprep.subr.mxu0 %v72
  %181 = vmatpush1.msra.mxu0 %v71
  %182 = vmatprep.subr.mxu0 %v76
  %183 = vmatpush1.msra.mxu0 %v75
  %184 = vmatprep.subr.mxu0 %v80
  %185 = vmatpush1.msra.mxu0 %v79
  %186 = vmatprep.subr.mxu0 %v84
  %187 = vmatpush1.msra.mxu0 %v83
  %188 = vmatprep.subr.mxu0 %v88
  %189 = vmatpush1.msra.mxu0 %v87
  %190 = vmatprep.subr.mxu0 %v92
  %191 = vmatpush1.msra.mxu0 %v91
  %192 = vmatprep.subr.mxu0 %v96
  %193 = vmatpush1.msra.mxu0 %v95
  %194 = vmatprep.subr.mxu0 %v100
  %195 = vmatpush1.msra.mxu0 %v99
  %196 = vmatprep.subr.mxu0 %v104
  %197 = vmatpush1.msra.mxu0 %v103
  %198 = vmatprep.subr.mxu0 %v108
  %199 = vmatpush1.msra.mxu0 %v107
  %200 = vmatprep.subr.mxu0 %v112
  %201 = vmatpush1.msra.mxu0 %v111
  %202 = vmatprep.subr.mxu0 %v116
  %203 = vmatpush1.msra.mxu0 %v115
  %204 = vmatprep.subr.mxu0 %v120
  %205 = vmatpush1.msra.mxu0 %v119
  %206 = vmatprep.subr.mxu0 %v124
  %207 = vmatpush1.msra.mxu0 %v123
  %208 = vmatprep.subr.mxu0 %v128
  %209 = vmatpush1.msra.mxu0 %v127
  %210 = vmatprep.subr.mxu0 %v132
  %211 = vmatpush1.msra.mxu0 %v131
  %212 = vmatprep.subr.mxu0 %v136
  %213 = vmatpush1.msra.mxu0 %v135
  %214 = vmatprep.subr.mxu0 %v140
  %215 = vmatpush1.msra.mxu0 %v139
  %216 = vmatprep.subr.mxu0 %v144
  %217 = vmatpush1.msra.mxu0 %v143
  %218 = vmatprep.subr.mxu0 %v148
  %219 = vmatpush1.msra.mxu0 %v147
  %220 = vmatprep.mubr.f32.mxu0 %v21
  %221 = vmatmul.mubr.f32.gmra.mrb[0].mxu0 %v20
  %v222 = vpop.f32.mrb[0].mxu0
  %v223 = vadd.f32 %v154, %v222
  %v224 = vpop.f32.mrb[0].mxu0
  %v225 = vadd.f32 %v154, %v224
  %226 = vdwg.mxu0
  %227 = vmatprep.subr.mxu0 %v26
  %228 = vmatpush1.msra.mxu0 %v25
  %229 = vmatprep.subr.mxu0 %v30
  %230 = vmatpush1.msra.mxu0 %v29
  %231 = vmatprep.subr.mxu0 %v34
  %232 = vmatpush1.msra.mxu0 %v33
  %233 = vmatprep.subr.mxu0 %v38
  %234 = vmatpush1.msra.mxu0 %v37
  %235 = vmatprep.subr.mxu0 %v42
  %236 = vmatpush1.msra.mxu0 %v41
  %237 = vmatprep.subr.mxu0 %v46
  %238 = vmatpush1.msra.mxu0 %v45
  %239 = vmatprep.subr.mxu0 %v50
  %240 = vmatpush1.msra.mxu0 %v49
  %241 = vmatprep.subr.mxu0 %v54
  %242 = vmatpush1.msra.mxu0 %v53
  %243 = vmatprep.subr.mxu0 %v58
  %244 = vmatpush1.msra.mxu0 %v57
  %245 = vmatprep.subr.mxu0 %v62
  %246 = vmatpush1.msra.mxu0 %v61
  %247 = vmatprep.subr.mxu0 %v66
  %248 = vmatpush1.msra.mxu0 %v65
  %249 = vmatprep.subr.mxu0 %v70
  %250 = vmatpush1.msra.mxu0 %v69
  %251 = vmatprep.subr.mxu0 %v74
  %252 = vmatpush1.msra.mxu0 %v73
  %253 = vmatprep.subr.mxu0 %v78
  %254 = vmatpush1.msra.mxu0 %v77
  %255 = vmatprep.subr.mxu0 %v82
  %256 = vmatpush1.msra.mxu0 %v81
  %257 = vmatprep.subr.mxu0 %v86
  %258 = vmatpush1.msra.mxu0 %v85
  %259 = vmatprep.subr.mxu0 %v90
  %260 = vmatpush1.msra.mxu0 %v89
  %261 = vmatprep.subr.mxu0 %v94
  %262 = vmatpush1.msra.mxu0 %v93
  %263 = vmatprep.subr.mxu0 %v98
  %264 = vmatpush1.msra.mxu0 %v97
  %265 = vmatprep.subr.mxu0 %v102
  %266 = vmatpush1.msra.mxu0 %v101
  %267 = vmatprep.subr.mxu0 %v106
  %268 = vmatpush1.msra.mxu0 %v105
  %269 = vmatprep.subr.mxu0 %v110
  %270 = vmatpush1.msra.mxu0 %v109
  %271 = vmatprep.subr.mxu0 %v114
  %272 = vmatpush1.msra.mxu0 %v113
  %273 = vmatprep.subr.mxu0 %v118
  %274 = vmatpush1.msra.mxu0 %v117
  %275 = vmatprep.subr.mxu0 %v122
  %276 = vmatpush1.msra.mxu0 %v121
  %277 = vmatprep.subr.mxu0 %v126
  %278 = vmatpush1.msra.mxu0 %v125
  %279 = vmatprep.subr.mxu0 %v130
  %280 = vmatpush1.msra.mxu0 %v129
  %281 = vmatprep.subr.mxu0 %v134
  %282 = vmatpush1.msra.mxu0 %v133
  %283 = vmatprep.subr.mxu0 %v138
  %284 = vmatpush1.msra.mxu0 %v137
  %285 = vmatprep.subr.mxu0 %v142
  %286 = vmatpush1.msra.mxu0 %v141
  %287 = vmatprep.subr.mxu0 %v146
  %288 = vmatpush1.msra.mxu0 %v145
  %289 = vmatprep.subr.mxu0 %v150
  %290 = vmatpush1.msra.mxu0 %v149
  %291 = vmatprep.mubr.f32.mxu0 %v21
  %292 = vmatmul.mubr.f32.gmra.mrb[0].mxu0 %v20
  %v293 = vpop.f32.mrb[0].mxu0
  %v294 = vadd.f32 %v154, %v293
  %v295 = vpop.f32.mrb[0].mxu0
  %v296 = vadd.f32 %v154, %v295
  %297 = vdwg.mxu0
  %v298 = vadd.f32 %v223, %v225
  %v299 = vadd.f32 %v298, %v294
  %v300 = vadd.f32 %v299, %v296
  %301 = vadd.xlane.f32.xlu0 %v300
  %v302 = vpop.xlane.xlu0 %301
  %v303 = vadd.f32 %v302, 0.0
  %v304 = vmul.f32 %v223, %v223
  %v305 = vmul.f32 %v225, %v225
  %v306 = vmul.f32 %v294, %v294
  %v307 = vmul.f32 %v296, %v296
  %v308 = vadd.f32 %v304, %v305
  %v309 = vadd.f32 %v308, %v306
  %v310 = vadd.f32 %v309, %v307
  %311 = vadd.xlane.f32.xlu0 %v310
  %v312 = vpop.xlane.xlu0 %311
  %v313 = vadd.f32 %v312, 0.0
  %s314 = scalar_lea.vmem %s0, 1024
  %v315 = vld [vmem:[%s314] sm:$0xff]
  %v316 = vld [vmem:[%s314 + $0x8] sm:$0xff]
  %v317 = vld [vmem:[%s314 + $0x10] sm:$0xff]
  %v318 = vld [vmem:[%s314 + $0x18] sm:$0xff]
  %v319 = vld [vmem:[%s314 + $0x20] sm:$0xff]
  %v320 = vld [vmem:[%s314 + $0x28] sm:$0xff]
  %v321 = vld [vmem:[%s314 + $0x30] sm:$0xff]
  %v322 = vld [vmem:[%s314 + $0x38] sm:$0xff]
  %v323 = vld [vmem:[%s314 + $0x40] sm:$0xff]
  %v324 = vld [vmem:[%s314 + $0x48] sm:$0xff]
  %v325 = vld [vmem:[%s314 + $0x50] sm:$0xff]
  %v326 = vld [vmem:[%s314 + $0x58] sm:$0xff]
  %v327 = vld [vmem:[%s314 + $0x60] sm:$0xff]
  %v328 = vld [vmem:[%s314 + $0x68] sm:$0xff]
  %v329 = vld [vmem:[%s314 + $0x70] sm:$0xff]
  %v330 = vld [vmem:[%s314 + $0x78] sm:$0xff]
  %v331 = vld [vmem:[%s314 + $0x80] sm:$0xff]
  %v332 = vld [vmem:[%s314 + $0x88] sm:$0xff]
  %v333 = vld [vmem:[%s314 + $0x90] sm:$0xff]
  %v334 = vld [vmem:[%s314 + $0x98] sm:$0xff]
  %v335 = vld [vmem:[%s314 + $0xa0] sm:$0xff]
  %v336 = vld [vmem:[%s314 + $0xa8] sm:$0xff]
  %v337 = vld [vmem:[%s314 + $0xb0] sm:$0xff]
  %v338 = vld [vmem:[%s314 + $0xb8] sm:$0xff]
  %v339 = vld [vmem:[%s314 + $0xc0] sm:$0xff]
  %v340 = vld [vmem:[%s314 + $0xc8] sm:$0xff]
  %v341 = vld [vmem:[%s314 + $0xd0] sm:$0xff]
  %v342 = vld [vmem:[%s314 + $0xd8] sm:$0xff]
  %v343 = vld [vmem:[%s314 + $0xe0] sm:$0xff]
  %v344 = vld [vmem:[%s314 + $0xe8] sm:$0xff]
  %v345 = vld [vmem:[%s314 + $0xf0] sm:$0xff]
  %v346 = vld [vmem:[%s314 + $0xf8] sm:$0xff]
  %v347 = vld [vmem:[%s314 + $0x100] sm:$0xff]
  %v348 = vld [vmem:[%s314 + $0x108] sm:$0xff]
  %v349 = vld [vmem:[%s314 + $0x110] sm:$0xff]
  %v350 = vld [vmem:[%s314 + $0x118] sm:$0xff]
  %v351 = vld [vmem:[%s314 + $0x120] sm:$0xff]
  %v352 = vld [vmem:[%s314 + $0x128] sm:$0xff]
  %v353 = vld [vmem:[%s314 + $0x130] sm:$0xff]
  %v354 = vld [vmem:[%s314 + $0x138] sm:$0xff]
  %v355 = vld [vmem:[%s314 + $0x140] sm:$0xff]
  %v356 = vld [vmem:[%s314 + $0x148] sm:$0xff]
  %v357 = vld [vmem:[%s314 + $0x150] sm:$0xff]
  %v358 = vld [vmem:[%s314 + $0x158] sm:$0xff]
  %v359 = vld [vmem:[%s314 + $0x160] sm:$0xff]
  %v360 = vld [vmem:[%s314 + $0x168] sm:$0xff]
  %v361 = vld [vmem:[%s314 + $0x170] sm:$0xff]
  %v362 = vld [vmem:[%s314 + $0x178] sm:$0xff]
  %v363 = vld [vmem:[%s314 + $0x180] sm:$0xff]
  %v364 = vld [vmem:[%s314 + $0x188] sm:$0xff]
  %v365 = vld [vmem:[%s314 + $0x190] sm:$0xff]
  %v366 = vld [vmem:[%s314 + $0x198] sm:$0xff]
  %v367 = vld [vmem:[%s314 + $0x1a0] sm:$0xff]
  %v368 = vld [vmem:[%s314 + $0x1a8] sm:$0xff]
  %v369 = vld [vmem:[%s314 + $0x1b0] sm:$0xff]
  %v370 = vld [vmem:[%s314 + $0x1b8] sm:$0xff]
  %v371 = vld [vmem:[%s314 + $0x1c0] sm:$0xff]
  %v372 = vld [vmem:[%s314 + $0x1c8] sm:$0xff]
  %v373 = vld [vmem:[%s314 + $0x1d0] sm:$0xff]
  %v374 = vld [vmem:[%s314 + $0x1d8] sm:$0xff]
  %v375 = vld [vmem:[%s314 + $0x1e0] sm:$0xff]
  %v376 = vld [vmem:[%s314 + $0x1e8] sm:$0xff]
  %v377 = vld [vmem:[%s314 + $0x1f0] sm:$0xff]
  %v378 = vld [vmem:[%s314 + $0x1f8] sm:$0xff]
  %v379 = vld [vmem:[%s314 + $0x200] sm:$0xff]
  %v380 = vld [vmem:[%s314 + $0x208] sm:$0xff]
  %v381 = vld [vmem:[%s314 + $0x210] sm:$0xff]
  %v382 = vld [vmem:[%s314 + $0x218] sm:$0xff]
  %v383 = vld [vmem:[%s314 + $0x220] sm:$0xff]
  %v384 = vld [vmem:[%s314 + $0x228] sm:$0xff]
  %v385 = vld [vmem:[%s314 + $0x230] sm:$0xff]
  %v386 = vld [vmem:[%s314 + $0x238] sm:$0xff]
  %v387 = vld [vmem:[%s314 + $0x240] sm:$0xff]
  %v388 = vld [vmem:[%s314 + $0x248] sm:$0xff]
  %v389 = vld [vmem:[%s314 + $0x250] sm:$0xff]
  %v390 = vld [vmem:[%s314 + $0x258] sm:$0xff]
  %v391 = vld [vmem:[%s314 + $0x260] sm:$0xff]
  %v392 = vld [vmem:[%s314 + $0x268] sm:$0xff]
  %v393 = vld [vmem:[%s314 + $0x270] sm:$0xff]
  %v394 = vld [vmem:[%s314 + $0x278] sm:$0xff]
  %v395 = vld [vmem:[%s314 + $0x280] sm:$0xff]
  %v396 = vld [vmem:[%s314 + $0x288] sm:$0xff]
  %v397 = vld [vmem:[%s314 + $0x290] sm:$0xff]
  %v398 = vld [vmem:[%s314 + $0x298] sm:$0xff]
  %v399 = vld [vmem:[%s314 + $0x2a0] sm:$0xff]
  %v400 = vld [vmem:[%s314 + $0x2a8] sm:$0xff]
  %v401 = vld [vmem:[%s314 + $0x2b0] sm:$0xff]
  %v402 = vld [vmem:[%s314 + $0x2b8] sm:$0xff]
  %v403 = vld [vmem:[%s314 + $0x2c0] sm:$0xff]
  %v404 = vld [vmem:[%s314 + $0x2c8] sm:$0xff]
  %v405 = vld [vmem:[%s314 + $0x2d0] sm:$0xff]
  %v406 = vld [vmem:[%s314 + $0x2d8] sm:$0xff]
  %v407 = vld [vmem:[%s314 + $0x2e0] sm:$0xff]
  %v408 = vld [vmem:[%s314 + $0x2e8] sm:$0xff]
  %v409 = vld [vmem:[%s314 + $0x2f0] sm:$0xff]
  %v410 = vld [vmem:[%s314 + $0x2f8] sm:$0xff]
  %v411 = vld [vmem:[%s314 + $0x300] sm:$0xff]
  %v412 = vld [vmem:[%s314 + $0x308] sm:$0xff]
  %v413 = vld [vmem:[%s314 + $0x310] sm:$0xff]
  %v414 = vld [vmem:[%s314 + $0x318] sm:$0xff]
  %v415 = vld [vmem:[%s314 + $0x320] sm:$0xff]
  %v416 = vld [vmem:[%s314 + $0x328] sm:$0xff]
  %v417 = vld [vmem:[%s314 + $0x330] sm:$0xff]
  %v418 = vld [vmem:[%s314 + $0x338] sm:$0xff]
  %v419 = vld [vmem:[%s314 + $0x340] sm:$0xff]
  %v420 = vld [vmem:[%s314 + $0x348] sm:$0xff]
  %v421 = vld [vmem:[%s314 + $0x350] sm:$0xff]
  %v422 = vld [vmem:[%s314 + $0x358] sm:$0xff]
  %v423 = vld [vmem:[%s314 + $0x360] sm:$0xff]
  %v424 = vld [vmem:[%s314 + $0x368] sm:$0xff]
  %v425 = vld [vmem:[%s314 + $0x370] sm:$0xff]
  %v426 = vld [vmem:[%s314 + $0x378] sm:$0xff]
  %v427 = vld [vmem:[%s314 + $0x380] sm:$0xff]
  %v428 = vld [vmem:[%s314 + $0x388] sm:$0xff]
  %v429 = vld [vmem:[%s314 + $0x390] sm:$0xff]
  %v430 = vld [vmem:[%s314 + $0x398] sm:$0xff]
  %v431 = vld [vmem:[%s314 + $0x3a0] sm:$0xff]
  %v432 = vld [vmem:[%s314 + $0x3a8] sm:$0xff]
  %v433 = vld [vmem:[%s314 + $0x3b0] sm:$0xff]
  %v434 = vld [vmem:[%s314 + $0x3b8] sm:$0xff]
  %v435 = vld [vmem:[%s314 + $0x3c0] sm:$0xff]
  %v436 = vld [vmem:[%s314 + $0x3c8] sm:$0xff]
  %v437 = vld [vmem:[%s314 + $0x3d0] sm:$0xff]
  %v438 = vld [vmem:[%s314 + $0x3d8] sm:$0xff]
  %v439 = vld [vmem:[%s314 + $0x3e0] sm:$0xff]
  %v440 = vld [vmem:[%s314 + $0x3e8] sm:$0xff]
  %v441 = vld [vmem:[%s314 + $0x3f0] sm:$0xff]
  %v442 = vld [vmem:[%s314 + $0x3f8] sm:$0xff]
  %443 = vmatprep.subr.mxu0 %v316
  %444 = vmatpush1.msra.mxu0 %v315
  %445 = vmatprep.subr.mxu0 %v320
  %446 = vmatpush1.msra.mxu0 %v319
  %447 = vmatprep.subr.mxu0 %v324
  %448 = vmatpush1.msra.mxu0 %v323
  %449 = vmatprep.subr.mxu0 %v328
  %450 = vmatpush1.msra.mxu0 %v327
  %451 = vmatprep.subr.mxu0 %v332
  %452 = vmatpush1.msra.mxu0 %v331
  %453 = vmatprep.subr.mxu0 %v336
  %454 = vmatpush1.msra.mxu0 %v335
  %455 = vmatprep.subr.mxu0 %v340
  %456 = vmatpush1.msra.mxu0 %v339
  %457 = vmatprep.subr.mxu0 %v344
  %458 = vmatpush1.msra.mxu0 %v343
  %459 = vmatprep.subr.mxu0 %v348
  %460 = vmatpush1.msra.mxu0 %v347
  %461 = vmatprep.subr.mxu0 %v352
  %462 = vmatpush1.msra.mxu0 %v351
  %463 = vmatprep.subr.mxu0 %v356
  %464 = vmatpush1.msra.mxu0 %v355
  %465 = vmatprep.subr.mxu0 %v360
  %466 = vmatpush1.msra.mxu0 %v359
  %467 = vmatprep.subr.mxu0 %v364
  %468 = vmatpush1.msra.mxu0 %v363
  %469 = vmatprep.subr.mxu0 %v368
  %470 = vmatpush1.msra.mxu0 %v367
  %471 = vmatprep.subr.mxu0 %v372
  %472 = vmatpush1.msra.mxu0 %v371
  %473 = vmatprep.subr.mxu0 %v376
  %474 = vmatpush1.msra.mxu0 %v375
  %475 = vmatprep.subr.mxu0 %v380
  %476 = vmatpush1.msra.mxu0 %v379
  %477 = vmatprep.subr.mxu0 %v384
  %478 = vmatpush1.msra.mxu0 %v383
  %479 = vmatprep.subr.mxu0 %v388
  %480 = vmatpush1.msra.mxu0 %v387
  %481 = vmatprep.subr.mxu0 %v392
  %482 = vmatpush1.msra.mxu0 %v391
  %483 = vmatprep.subr.mxu0 %v396
  %484 = vmatpush1.msra.mxu0 %v395
  %485 = vmatprep.subr.mxu0 %v400
  %486 = vmatpush1.msra.mxu0 %v399
  %487 = vmatprep.subr.mxu0 %v404
  %488 = vmatpush1.msra.mxu0 %v403
  %489 = vmatprep.subr.mxu0 %v408
  %490 = vmatpush1.msra.mxu0 %v407
  %491 = vmatprep.subr.mxu0 %v412
  %492 = vmatpush1.msra.mxu0 %v411
  %493 = vmatprep.subr.mxu0 %v416
  %494 = vmatpush1.msra.mxu0 %v415
  %495 = vmatprep.subr.mxu0 %v420
  %496 = vmatpush1.msra.mxu0 %v419
  %497 = vmatprep.subr.mxu0 %v424
  %498 = vmatpush1.msra.mxu0 %v423
  %499 = vmatprep.subr.mxu0 %v428
  %500 = vmatpush1.msra.mxu0 %v427
  %501 = vmatprep.subr.mxu0 %v432
  %502 = vmatpush1.msra.mxu0 %v431
  %503 = vmatprep.subr.mxu0 %v436
  %504 = vmatpush1.msra.mxu0 %v435
  %505 = vmatprep.subr.mxu0 %v440
  %506 = vmatpush1.msra.mxu0 %v439
  %507 = vmatprep.mubr.f32.mxu0 %v21
  %508 = vmatmul.mubr.f32.gmra.mrb[0].mxu0 %v20
  %v509 = vpop.f32.mrb[0].mxu0
  %v510 = vadd.f32 %v154, %v509
  %v511 = vpop.f32.mrb[0].mxu0
  %v512 = vadd.f32 %v154, %v511
  %513 = vdwg.mxu0
  %514 = vmatprep.subr.mxu0 %v318
  %515 = vmatpush1.msra.mxu0 %v317
  %516 = vmatprep.subr.mxu0 %v322
  %517 = vmatpush1.msra.mxu0 %v321
  %518 = vmatprep.subr.mxu0 %v326
  %519 = vmatpush1.msra.mxu0 %v325
  %520 = vmatprep.subr.mxu0 %v330
  %521 = vmatpush1.msra.mxu0 %v329
  %522 = vmatprep.subr.mxu0 %v334
  %523 = vmatpush1.msra.mxu0 %v333
  %524 = vmatprep.subr.mxu0 %v338
  %525 = vmatpush1.msra.mxu0 %v337
  %526 = vmatprep.subr.mxu0 %v342
  %527 = vmatpush1.msra.mxu0 %v341
  %528 = vmatprep.subr.mxu0 %v346
  %529 = vmatpush1.msra.mxu0 %v345
  %530 = vmatprep.subr.mxu0 %v350
  %531 = vmatpush1.msra.mxu0 %v349
  %532 = vmatprep.subr.mxu0 %v354
  %533 = vmatpush1.msra.mxu0 %v353
  %534 = vmatprep.subr.mxu0 %v358
  %535 = vmatpush1.msra.mxu0 %v357
  %536 = vmatprep.subr.mxu0 %v362
  %537 = vmatpush1.msra.mxu0 %v361
  %538 = vmatprep.subr.mxu0 %v366
  %539 = vmatpush1.msra.mxu0 %v365
  %540 = vmatprep.subr.mxu0 %v370
  %541 = vmatpush1.msra.mxu0 %v369
  %542 = vmatprep.subr.mxu0 %v374
  %543 = vmatpush1.msra.mxu0 %v373
  %544 = vmatprep.subr.mxu0 %v378
  %545 = vmatpush1.msra.mxu0 %v377
  %546 = vmatprep.subr.mxu0 %v382
  %547 = vmatpush1.msra.mxu0 %v381
  %548 = vmatprep.subr.mxu0 %v386
  %549 = vmatpush1.msra.mxu0 %v385
  %550 = vmatprep.subr.mxu0 %v390
  %551 = vmatpush1.msra.mxu0 %v389
  %552 = vmatprep.subr.mxu0 %v394
  %553 = vmatpush1.msra.mxu0 %v393
  %554 = vmatprep.subr.mxu0 %v398
  %555 = vmatpush1.msra.mxu0 %v397
  %556 = vmatprep.subr.mxu0 %v402
  %557 = vmatpush1.msra.mxu0 %v401
  %558 = vmatprep.subr.mxu0 %v406
  %559 = vmatpush1.msra.mxu0 %v405
  %560 = vmatprep.subr.mxu0 %v410
  %561 = vmatpush1.msra.mxu0 %v409
  %562 = vmatprep.subr.mxu0 %v414
  %563 = vmatpush1.msra.mxu0 %v413
  %564 = vmatprep.subr.mxu0 %v418
  %565 = vmatpush1.msra.mxu0 %v417
  %566 = vmatprep.subr.mxu0 %v422
  %567 = vmatpush1.msra.mxu0 %v421
  %568 = vmatprep.subr.mxu0 %v426
  %569 = vmatpush1.msra.mxu0 %v425
  %570 = vmatprep.subr.mxu0 %v430
  %571 = vmatpush1.msra.mxu0 %v429
  %572 = vmatprep.subr.mxu0 %v434
  %573 = vmatpush1.msra.mxu0 %v433
  %574 = vmatprep.subr.mxu0 %v438
  %575 = vmatpush1.msra.mxu0 %v437
  %576 = vmatprep.subr.mxu0 %v442
  %577 = vmatpush1.msra.mxu0 %v441
  %578 = vmatprep.mubr.f32.mxu0 %v21
  %579 = vmatmul.mubr.f32.gmra.mrb[0].mxu0 %v20
  %v580 = vpop.f32.mrb[0].mxu0
  %v581 = vadd.f32 %v154, %v580
  %v582 = vpop.f32.mrb[0].mxu0
  %v583 = vadd.f32 %v154, %v582
  %584 = vdwg.mxu0
  %v585 = vadd.f32 %v510, %v512
  %v586 = vadd.f32 %v585, %v581
  %v587 = vadd.f32 %v586, %v583
  %588 = vadd.xlane.f32.xlu0 %v587
  %v589 = vpop.xlane.xlu0 %588
  %v590 = vadd.f32 %v303, %v589
  %v591 = vmul.f32 %v510, %v510
  %v592 = vmul.f32 %v512, %v512
  %v593 = vmul.f32 %v581, %v581
  %v594 = vmul.f32 %v583, %v583
  %v595 = vadd.f32 %v591, %v592
  %v596 = vadd.f32 %v595, %v593
  %v597 = vadd.f32 %v596, %v594
  %598 = vadd.xlane.f32.xlu0 %v597
  %v599 = vpop.xlane.xlu0 %598
  %v600 = vadd.f32 %v313, %v599
  %v601 = vmul.f32 %v590, 0.0009765625
  %v602 = vmul.f32 %v600, 0.0009765625
  %v603 = vmul.f32 %v601, %v601
  %v604 = vsub.f32 %v602, %v603
  %v605 = vld [vmem:[%s3] sm:$0xff]
  %v606 = vadd.f32 %v604, 1e-05
  %v607 = vrsqrt.pop %v606
  %v608 = vmul.f32 %v605, %v607
  %v609 = vld [vmem:[%s4] sm:$0xff]
  %v610 = vmul.f32 %v601, %v608
  %v611 = vsub.f32 %v609, %v610
  %613 = vset.pattern.permute.xlu0 0
  %614 = vperm.xlu0 %613, %v608
  %v615 = vpop.permute.xlu0 %614
  %v617 = vmul.f32 %v223, %v615
  %v618 = vmul.f32 %v225, %v615
  %v619 = vmul.f32 %v294, %v615
  %v620 = vmul.f32 %v296, %v615
  %622 = vset.pattern.permute.xlu0 0
  %623 = vperm.xlu0 %622, %v611
  %v624 = vpop.permute.xlu0 %623
  %v626 = vadd.f32 %v617, %v624
  %v627 = vadd.f32 %v618, %v624
  %v628 = vadd.f32 %v619, %v624
  %v629 = vadd.f32 %v620, %v624
  %vm630 = vcmp.ge.f32.partialorder %v626, 0.0
  %vm631 = vcmp.ge.f32.partialorder %v627, 0.0
  %vm632 = vcmp.ge.f32.partialorder %v628, 0.0
  %vm633 = vcmp.ge.f32.partialorder %v629, 0.0
  %v634 = vmul.f32 %v626, 0.01
  %v635 = vmul.f32 %v627, 0.01
  %v636 = vmul.f32 %v628, 0.01
  %v637 = vmul.f32 %v629, 0.01
  %v638 = vsel %vm630, %v626, %v634
  %v639 = vsel %vm631, %v627, %v635
  %v640 = vsel %vm632, %v628, %v636
  %v641 = vsel %vm633, %v629, %v637
  %642 = vst [vmem:[%s5] sm:$0xff] %v638
  %643 = vst [vmem:[%s5 + $0x8] sm:$0xff] %v639
  %644 = vst [vmem:[%s5 + $0x10] sm:$0xff] %v640
  %645 = vst [vmem:[%s5 + $0x18] sm:$0xff] %v641
  %v646 = vmul.f32 %v510, %v615
  %v647 = vmul.f32 %v512, %v615
  %v648 = vmul.f32 %v581, %v615
  %v649 = vmul.f32 %v583, %v615
  %v650 = vadd.f32 %v646, %v624
  %v651 = vadd.f32 %v647, %v624
  %v652 = vadd.f32 %v648, %v624
  %v653 = vadd.f32 %v649, %v624
  %vm654 = vcmp.ge.f32.partialorder %v650, 0.0
  %vm655 = vcmp.ge.f32.partialorder %v651, 0.0
  %vm656 = vcmp.ge.f32.partialorder %v652, 0.0
  %vm657 = vcmp.ge.f32.partialorder %v653, 0.0
  %v658 = vmul.f32 %v650, 0.01
  %v659 = vmul.f32 %v651, 0.01
  %v660 = vmul.f32 %v652, 0.01
  %v661 = vmul.f32 %v653, 0.01
  %v662 = vsel %vm654, %v650, %v658
  %v663 = vsel %vm655, %v651, %v659
  %v664 = vsel %vm656, %v652, %v660
  %v665 = vsel %vm657, %v653, %v661
  %s666 = scalar_lea.vmem %s5, 32
  %667 = vst [vmem:[%s666] sm:$0xff] %v662
  %668 = vst [vmem:[%s666 + $0x8] sm:$0xff] %v663
  %669 = vst [vmem:[%s666 + $0x10] sm:$0xff] %v664
  %670 = vst [vmem:[%s666 + $0x18] sm:$0xff] %v665
  // Predicated region
  $region22: #{basic_block_inplace.4} parent=0 // pred_check
    _
  $region23: #{basic_block_inplace.4} parent=0 // pred_check_branch
    %672 = sbr.rel (0) target = $region25
  $region24: #{basic_block_inplace.4} parent=0 // pred_region
    _
  $region25: #{basic_block_inplace.4} parent=0 // pred_fallthru
    _
  // Predicated region
  $region26: #{basic_block_inplace.4} parent=0 // pred_check
    _
  $region27: #{basic_block_inplace.4} parent=0 // pred_check_branch
    %674 = sbr.rel (0) target = $region29
  $region28: #{basic_block_inplace.4} parent=0 // pred_region
    _
  $region29: #{basic_block_inplace.4} parent=0 // pred_fallthru
    _

</llo_original>
